<compile_context>
chip_gen: v5e
topology: v5e:2x2
jax: 0.10.0
libtpu: 0.0.40
codegen_flags: <defaults>
</compile_context>

<pallas_src>
import jax
import jax.numpy as jnp
from jax.experimental import pallas as pl
from jax.experimental.pallas import tpu as pltpu

# ----------------------------- configuration --------------------------------
N_INST = 8      # instances per bag (after x.squeeze(0))
CIN    = 4      # input channels
HS     = 16     # spatial height
WS     = 16     # spatial width
FCONV  = 8      # conv feature channels of the synthetic CNN
L      = 1000   # logical feature dim (module's self.L)
LP     = 1024   # lane-padded feature dim (zero-padded params; math unchanged)
D      = 64     # attention hidden dim
NCLS   = 3      # classes
OUTW   = 8      # lane width of the packed classifier / output row (>= NCLS)
HW     = HS * WS
ROWS   = HW * N_INST      # 2048 conv columns, lane-ordered (n, h, w)
KC     = 9 * CIN          # 36 im2col rows (tap, cin)


# ----------------------------- fused Pallas kernel ---------------------------
def fused_mil_kernel(xt_ref, wct_ref, bconv_ref, w1_ref, b1_ref,
                     pw_ref, ba1_ref, wa2_ref, ba2_ref, bc_ref,
                     out_ref):
    """Whole forward pass in one kernel invocation (grid = ()).

    xt_ref  : (KC, ROWS) bf16 transposed im2col input, lanes ordered (n, h, w)
    wct_ref : (FCONV, KC) bf16 conv weights (one dense matmul for all 9 taps)
    pw_ref  : (LP, D + OUTW) bf16 packed [wa1 | wc | 0] attention+classifier
    out_ref : (2, OUTW) f32; row 0 = Y_prob (lanes 0..NCLS-1), row 1 = A
    """
    # ---- synthetic CNN: single dense 3x3-conv matmul + bias + ReLU ----------
    conv = jnp.dot(wct_ref[...], xt_ref[...],
                   preferred_element_type=jnp.float32)            # (FCONV, ROWS)
    y = jnp.maximum(conv + bconv_ref[...], 0.0)                   # bias + ReLU

    # ---- global average pool + (FCONV, n)-column -> (n, FCONV)-row bridge ---
    eye_f = (jax.lax.broadcasted_iota(jnp.int32, (FCONV, FCONV), 0) ==
             jax.lax.broadcasted_iota(jnp.int32, (FCONV, FCONV), 1)
             ).astype(jnp.float32)
    row_id = jax.lax.broadcasted_iota(jnp.int32, (N_INST, FCONV), 0)
    feats = jnp.zeros((N_INST, FCONV), jnp.float32)
    for n in range(N_INST):                                       # unrolled, tiny tiles
        col = jnp.sum(y[:, n * HW:(n + 1) * HW], axis=1, keepdims=True)  # (FCONV, 1)
        row = jnp.sum(col * eye_f, axis=0, keepdims=True)                # (1, FCONV)
        feats = feats + jnp.where(row_id == n, row, 0.0)                 # place at sublane n
    feats = feats * jnp.float32(1.0 / HW)                         # (N, FCONV)

    # ---- feature Linear (FCONV -> L, zero-padded to LP lanes) ---------------
    Hf = jnp.dot(feats, w1_ref[...],
                 preferred_element_type=jnp.float32) + b1_ref[...]        # (N, LP)

    # ---- attention hidden + folded per-instance classifier in ONE matmul ----
    cw = jnp.dot(Hf.astype(jnp.bfloat16), pw_ref[...],
                 preferred_element_type=jnp.float32)                      # (N, D+OUTW)
    att = jnp.tanh(cw[:, :D] + ba1_ref[...])                              # (N, D)
    cls = cw[:, D:]                                                       # (N, OUTW) = Hf @ [wc|0]

    # attention logit: degenerate (N,D)x(D,1) matmul as a VPU lane reduction
    a_logit = jnp.sum(att * wa2_ref[...], axis=1, keepdims=True) + ba2_ref[...]  # (N, 1)

    # softmax over instances (== torch transpose + softmax(dim=1))
    a_max = jnp.max(a_logit, axis=0, keepdims=True)
    a_exp = jnp.exp(a_logit - a_max)
    a_soft = a_exp / jnp.sum(a_exp, axis=0, keepdims=True)                # (N, 1)

    # folded classifier: logits = A @ (H @ wc) + bc  (== Linear(M), M = A @ H)
    # bc lanes >= NCLS hold -1e30 so the padded lanes vanish under softmax.
    logits = jnp.sum(a_soft * cls, axis=0, keepdims=True) + bc_ref[...]   # (1, OUTW)
    lmax = jnp.max(logits, axis=1, keepdims=True)
    e = jnp.exp(logits - lmax)
    y_prob = e / jnp.sum(e, axis=1, keepdims=True)                        # (1, OUTW)

    # lane-major attention weights (1, N) without a hardware transpose
    eye_n = (jax.lax.broadcasted_iota(jnp.int32, (N_INST, N_INST), 0) ==
             jax.lax.broadcasted_iota(jnp.int32, (N_INST, N_INST), 1)
             ).astype(jnp.float32)
    a_row = jnp.sum(a_soft * eye_n, axis=0, keepdims=True)                # (1, N)

    # single packed output: row 0 = Y_prob (lane-padded), row 1 = A
    out_row = jax.lax.broadcasted_iota(jnp.int32, (2, OUTW), 0)
    out_ref[...] = jnp.where(out_row == 0, y_prob, a_row)


# ------------------------------ JAX wrapper ----------------------------------
@jax.jit
def attention_modern_multi_forward(x, params):
    """x: (1, N, C, H, W) float32 (NCHW per instance). Returns (Y_prob, A)."""
    x = jnp.squeeze(x, axis=0)                                    # (N, C, H, W)
    xpad = jnp.pad(x, ((0, 0), (0, 0), (1, 1), (1, 1)))           # (N, C, H+2, W+2)
    # transposed im2col: rows = (tap, cin), lanes = (n, h, w) -> (36, 2048) bf16
    taps = jnp.stack([xpad[:, :, dy:dy + HS, dx:dx + WS]
                      for dy in range(3) for dx in range(3)], axis=0)  # (9, N, C, H, W)
    xt = jnp.transpose(taps, (0, 2, 1, 3, 4)).reshape(KC, ROWS).astype(jnp.bfloat16)

    vmem = pl.BlockSpec(memory_space=pltpu.MemorySpace.VMEM)
    out = pl.pallas_call(
        fused_mil_kernel,
        out_shape=jax.ShapeDtypeStruct((2, OUTW), jnp.float32),
        in_specs=[vmem] * 10,
        out_specs=vmem,
    )(xt,
      params["wct"], params["b_conv"],
      params["w1"], params["b1"],
      params["pw"], params["ba1"], params["wa2"], params["ba2"],
      params["bc"])
    return out[0:1, :NCLS], out[1:2, :]                           # Y_prob (1,3), A (1,N)


# ------------------------------ parameter init --------------------------------
def _uniform(key, shape, fan_in):
    bound = 1.0 / jnp.sqrt(jnp.float32(fan_in))
    return jax.random.uniform(key, shape, jnp.float32, -bound, bound)


def init_params(seed=0):
    keys = jax.random.split(jax.random.PRNGKey(seed), 10)
    pad_c = LP - L   # zero padding of the feature dim keeps the math identical

    w1  = _uniform(keys[2], (FCONV, L), FCONV)
    b1  = _uniform(keys[3], (1, L), FCONV)
    wa1 = _uniform(keys[4], (L, D), L)           # attention Linear(L, D) weight^T
    wc  = _uniform(keys[8], (L, NCLS), L)        # classifier Linear(L, 3) weight^T
    bc  = _uniform(keys[9], (1, NCLS), L)

    # packed [wa1 | wc | 0] -> one lane-dense (LP, D+OUTW) bf16 matmul operand
    pw = jnp.concatenate([wa1, wc, jnp.zeros((L, OUTW - NCLS), jnp.float32)], axis=1)
    pw = jnp.pad(pw, ((0, pad_c), (0, 0)))                       # (LP, D+OUTW)

    # classifier bias padded with -1e30 so padded softmax lanes contribute 0
    bc_pad = jnp.concatenate([bc, jnp.full((1, OUTW - NCLS), -1e30, jnp.float32)],
                             axis=1)                             # (1, OUTW)

    return {
        # synthetic CNN: conv3x3(same) as one (FCONV, 9*CIN) matmul, ReLU, GAP
        "wct":    _uniform(keys[0], (FCONV, KC), KC).astype(jnp.bfloat16),
        "b_conv": _uniform(keys[1], (FCONV, 1), KC),
        "w1":  jnp.pad(w1, ((0, 0), (0, pad_c))),                # (FCONV, LP)
        "b1":  jnp.pad(b1, ((0, 0), (0, pad_c))),                # (1, LP)
        # attention Linear(L,D) + classifier Linear(L,3) packed together
        "pw":  pw.astype(jnp.bfloat16),                          # (LP, D+OUTW) bf16
        "ba1": _uniform(keys[5], (1, D), L),
        "wa2": _uniform(keys[6], (1, D), D),                     # row form (torch (K, D))
        "ba2": _uniform(keys[7], (1, 1), D),
        "bc":  bc_pad,                                           # (1, OUTW)
    }


# ----------------------------------- main -------------------------------------
if __name__ == "__main__":
    params = init_params(seed=0)
    x = jax.random.normal(jax.random.PRNGKey(0),
                          (1, N_INST, CIN, HS, WS), dtype=jnp.float32)

    y_prob, A = attention_modern_multi_forward(x, params)
    y_prob, A = jax.block_until_ready((y_prob, A))

    assert y_prob.shape == (1, NCLS), y_prob.shape
    assert A.shape == (1, N_INST), A.shape
    assert bool(jnp.all(jnp.isfinite(y_prob))) and bool(jnp.all(jnp.isfinite(A)))
    # both softmax outputs must sum to 1
    assert abs(float(jnp.sum(y_prob)) - 1.0) < 1e-4
    assert abs(float(jnp.sum(A)) - 1.0) < 1e-4

    print("KERNEL_OK")
</pallas_src>

<mosaic_0001>
module attributes {stable_mosaic.version = 11 : i64} {
  func.func @fused_mil_kernel(%arg0: memref<36x2048xbf16, #tpu.memory_space<vmem>>, %arg1: memref<8x36xbf16, #tpu.memory_space<vmem>>, %arg2: memref<8x1xf32, #tpu.memory_space<vmem>>, %arg3: memref<8x1024xf32, #tpu.memory_space<vmem>>, %arg4: memref<1x1024xf32, #tpu.memory_space<vmem>>, %arg5: memref<1024x72xbf16, #tpu.memory_space<vmem>>, %arg6: memref<1x64xf32, #tpu.memory_space<vmem>>, %arg7: memref<1x64xf32, #tpu.memory_space<vmem>>, %arg8: memref<1x1xf32, #tpu.memory_space<vmem>>, %arg9: memref<1x8xf32, #tpu.memory_space<vmem>>, %arg10: memref<2x8xf32, #tpu.memory_space<vmem>>) attributes {dimension_semantics = [], scalar_prefetch = 0 : i64, scratch_operands = 0 : i64, tpu.core_type = #tpu.core_type<tc>} {
    %c0 = arith.constant 0 : index
    %c0_0 = arith.constant 0 : index
    %0 = vector.load %arg1[%c0, %c0_0] : memref<8x36xbf16, #tpu.memory_space<vmem>>, vector<8x36xbf16>
    %c0_1 = arith.constant 0 : index
    %c0_2 = arith.constant 0 : index
    %1 = vector.load %arg0[%c0_1, %c0_2] : memref<36x2048xbf16, #tpu.memory_space<vmem>>, vector<36x2048xbf16>
    %cst = arith.constant dense<0.000000e+00> : vector<8x2048xf32>
    %2 = tpu.matmul %0, %1, %cst {dimension_numbers = #tpu.dot_dimension_numbers<[1], [0], [0], [1], [0, 0, 1, 1], [], []>} : vector<8x36xbf16>, vector<36x2048xbf16>, vector<8x2048xf32> -> vector<8x2048xf32>
    %c0_3 = arith.constant 0 : index
    %c0_4 = arith.constant 0 : index
    %3 = vector.load %arg2[%c0_3, %c0_4] : memref<8x1xf32, #tpu.memory_space<vmem>>, vector<8x1xf32>
    %4 = vector.broadcast %3 : vector<8x1xf32> to vector<8x2048xf32>
    %5 = arith.addf %2, %4 : vector<8x2048xf32>
    %cst_5 = arith.constant 0.000000e+00 : f32
    %6 = vector.broadcast %cst_5 : f32 to vector<8x2048xf32>
    %7 = arith.maximumf %5, %6 : vector<8x2048xf32>
    %8 = tpu.iota {dimensions = array<i32: 0>} : vector<8x8xi32>
    %9 = tpu.iota {dimensions = array<i32: 1>} : vector<8x8xi32>
    %10 = arith.cmpi eq, %8, %9 : vector<8x8xi32>
    %11 = arith.extui %10 : vector<8x8xi1> to vector<8x8xi32>
    %12 = arith.sitofp %11 : vector<8x8xi32> to vector<8x8xf32>
    %13 = tpu.iota {dimensions = array<i32: 0>} : vector<8x8xi32>
    %cst_6 = arith.constant 0.000000e+00 : f32
    %14 = vector.broadcast %cst_6 : f32 to vector<8x8xf32>
    %15 = vector.extract_strided_slice %7 {offsets = [0, 0], sizes = [8, 256], strides = [1, 1]} : vector<8x2048xf32> to vector<8x256xf32>
    %cst_7 = arith.constant dense<0.000000e+00> : vector<8xf32>
    %16 = vector.multi_reduction <add>, %15, %cst_7 [1] : vector<8x256xf32> to vector<8xf32>
    %17 = vector.shape_cast %16 : vector<8xf32> to vector<8x1xf32>
    %18 = vector.broadcast %17 : vector<8x1xf32> to vector<8x8xf32>
    %19 = arith.mulf %18, %12 : vector<8x8xf32>
    %cst_8 = arith.constant dense<0.000000e+00> : vector<8xf32>
    %20 = vector.multi_reduction <add>, %19, %cst_8 [0] : vector<8x8xf32> to vector<8xf32>
    %21 = vector.shape_cast %20 : vector<8xf32> to vector<1x8xf32>
    %c0_i32 = arith.constant 0 : i32
    %22 = vector.broadcast %c0_i32 : i32 to vector<8x8xi32>
    %23 = arith.cmpi eq, %13, %22 : vector<8x8xi32>
    %cst_9 = arith.constant 0.000000e+00 : f32
    %24 = vector.shape_cast %21 : vector<1x8xf32> to vector<1x8xf32>
    %25 = vector.broadcast %24 : vector<1x8xf32> to vector<8x8xf32>
    %26 = vector.broadcast %cst_9 : f32 to vector<8x8xf32>
    %27 = arith.select %23, %25, %26 : vector<8x8xi1>, vector<8x8xf32>
    %28 = arith.addf %14, %27 : vector<8x8xf32>
    %29 = vector.extract_strided_slice %7 {offsets = [0, 256], sizes = [8, 256], strides = [1, 1]} : vector<8x2048xf32> to vector<8x256xf32>
    %cst_10 = arith.constant dense<0.000000e+00> : vector<8xf32>
    %30 = vector.multi_reduction <add>, %29, %cst_10 [1] : vector<8x256xf32> to vector<8xf32>
    %31 = vector.shape_cast %30 : vector<8xf32> to vector<8x1xf32>
    %32 = vector.broadcast %31 : vector<8x1xf32> to vector<8x8xf32>
    %33 = arith.mulf %32, %12 : vector<8x8xf32>
    %cst_11 = arith.constant dense<0.000000e+00> : vector<8xf32>
    %34 = vector.multi_reduction <add>, %33, %cst_11 [0] : vector<8x8xf32> to vector<8xf32>
    %35 = vector.shape_cast %34 : vector<8xf32> to vector<1x8xf32>
    %c1_i32 = arith.constant 1 : i32
    %36 = vector.broadcast %c1_i32 : i32 to vector<8x8xi32>
    %37 = arith.cmpi eq, %13, %36 : vector<8x8xi32>
    %cst_12 = arith.constant 0.000000e+00 : f32
    %38 = vector.shape_cast %35 : vector<1x8xf32> to vector<1x8xf32>
    %39 = vector.broadcast %38 : vector<1x8xf32> to vector<8x8xf32>
    %40 = vector.broadcast %cst_12 : f32 to vector<8x8xf32>
    %41 = arith.select %37, %39, %40 : vector<8x8xi1>, vector<8x8xf32>
    %42 = arith.addf %28, %41 : vector<8x8xf32>
    %43 = vector.extract_strided_slice %7 {offsets = [0, 512], sizes = [8, 256], strides = [1, 1]} : vector<8x2048xf32> to vector<8x256xf32>
    %cst_13 = arith.constant dense<0.000000e+00> : vector<8xf32>
    %44 = vector.multi_reduction <add>, %43, %cst_13 [1] : vector<8x256xf32> to vector<8xf32>
    %45 = vector.shape_cast %44 : vector<8xf32> to vector<8x1xf32>
    %46 = vector.broadcast %45 : vector<8x1xf32> to vector<8x8xf32>
    %47 = arith.mulf %46, %12 : vector<8x8xf32>
    %cst_14 = arith.constant dense<0.000000e+00> : vector<8xf32>
    %48 = vector.multi_reduction <add>, %47, %cst_14 [0] : vector<8x8xf32> to vector<8xf32>
    %49 = vector.shape_cast %48 : vector<8xf32> to vector<1x8xf32>
    %c2_i32 = arith.constant 2 : i32
    %50 = vector.broadcast %c2_i32 : i32 to vector<8x8xi32>
    %51 = arith.cmpi eq, %13, %50 : vector<8x8xi32>
    %cst_15 = arith.constant 0.000000e+00 : f32
    %52 = vector.shape_cast %49 : vector<1x8xf32> to vector<1x8xf32>
    %53 = vector.broadcast %52 : vector<1x8xf32> to vector<8x8xf32>
    %54 = vector.broadcast %cst_15 : f32 to vector<8x8xf32>
    %55 = arith.select %51, %53, %54 : vector<8x8xi1>, vector<8x8xf32>
    %56 = arith.addf %42, %55 : vector<8x8xf32>
    %57 = vector.extract_strided_slice %7 {offsets = [0, 768], sizes = [8, 256], strides = [1, 1]} : vector<8x2048xf32> to vector<8x256xf32>
    %cst_16 = arith.constant dense<0.000000e+00> : vector<8xf32>
    %58 = vector.multi_reduction <add>, %57, %cst_16 [1] : vector<8x256xf32> to vector<8xf32>
    %59 = vector.shape_cast %58 : vector<8xf32> to vector<8x1xf32>
    %60 = vector.broadcast %59 : vector<8x1xf32> to vector<8x8xf32>
    %61 = arith.mulf %60, %12 : vector<8x8xf32>
    %cst_17 = arith.constant dense<0.000000e+00> : vector<8xf32>
    %62 = vector.multi_reduction <add>, %61, %cst_17 [0] : vector<8x8xf32> to vector<8xf32>
    %63 = vector.shape_cast %62 : vector<8xf32> to vector<1x8xf32>
    %c3_i32 = arith.constant 3 : i32
    %64 = vector.broadcast %c3_i32 : i32 to vector<8x8xi32>
    %65 = arith.cmpi eq, %13, %64 : vector<8x8xi32>
    %cst_18 = arith.constant 0.000000e+00 : f32
    %66 = vector.shape_cast %63 : vector<1x8xf32> to vector<1x8xf32>
    %67 = vector.broadcast %66 : vector<1x8xf32> to vector<8x8xf32>
    %68 = vector.broadcast %cst_18 : f32 to vector<8x8xf32>
    %69 = arith.select %65, %67, %68 : vector<8x8xi1>, vector<8x8xf32>
    %70 = arith.addf %56, %69 : vector<8x8xf32>
    %71 = vector.extract_strided_slice %7 {offsets = [0, 1024], sizes = [8, 256], strides = [1, 1]} : vector<8x2048xf32> to vector<8x256xf32>
    %cst_19 = arith.constant dense<0.000000e+00> : vector<8xf32>
    %72 = vector.multi_reduction <add>, %71, %cst_19 [1] : vector<8x256xf32> to vector<8xf32>
    %73 = vector.shape_cast %72 : vector<8xf32> to vector<8x1xf32>
    %74 = vector.broadcast %73 : vector<8x1xf32> to vector<8x8xf32>
    %75 = arith.mulf %74, %12 : vector<8x8xf32>
    %cst_20 = arith.constant dense<0.000000e+00> : vector<8xf32>
    %76 = vector.multi_reduction <add>, %75, %cst_20 [0] : vector<8x8xf32> to vector<8xf32>
    %77 = vector.shape_cast %76 : vector<8xf32> to vector<1x8xf32>
    %c4_i32 = arith.constant 4 : i32
    %78 = vector.broadcast %c4_i32 : i32 to vector<8x8xi32>
    %79 = arith.cmpi eq, %13, %78 : vector<8x8xi32>
    %cst_21 = arith.constant 0.000000e+00 : f32
    %80 = vector.shape_cast %77 : vector<1x8xf32> to vector<1x8xf32>
    %81 = vector.broadcast %80 : vector<1x8xf32> to vector<8x8xf32>
    %82 = vector.broadcast %cst_21 : f32 to vector<8x8xf32>
    %83 = arith.select %79, %81, %82 : vector<8x8xi1>, vector<8x8xf32>
    %84 = arith.addf %70, %83 : vector<8x8xf32>
    %85 = vector.extract_strided_slice %7 {offsets = [0, 1280], sizes = [8, 256], strides = [1, 1]} : vector<8x2048xf32> to vector<8x256xf32>
    %cst_22 = arith.constant dense<0.000000e+00> : vector<8xf32>
    %86 = vector.multi_reduction <add>, %85, %cst_22 [1] : vector<8x256xf32> to vector<8xf32>
    %87 = vector.shape_cast %86 : vector<8xf32> to vector<8x1xf32>
    %88 = vector.broadcast %87 : vector<8x1xf32> to vector<8x8xf32>
    %89 = arith.mulf %88, %12 : vector<8x8xf32>
    %cst_23 = arith.constant dense<0.000000e+00> : vector<8xf32>
    %90 = vector.multi_reduction <add>, %89, %cst_23 [0] : vector<8x8xf32> to vector<8xf32>
    %91 = vector.shape_cast %90 : vector<8xf32> to vector<1x8xf32>
    %c5_i32 = arith.constant 5 : i32
    %92 = vector.broadcast %c5_i32 : i32 to vector<8x8xi32>
    %93 = arith.cmpi eq, %13, %92 : vector<8x8xi32>
    %cst_24 = arith.constant 0.000000e+00 : f32
    %94 = vector.shape_cast %91 : vector<1x8xf32> to vector<1x8xf32>
    %95 = vector.broadcast %94 : vector<1x8xf32> to vector<8x8xf32>
    %96 = vector.broadcast %cst_24 : f32 to vector<8x8xf32>
    %97 = arith.select %93, %95, %96 : vector<8x8xi1>, vector<8x8xf32>
    %98 = arith.addf %84, %97 : vector<8x8xf32>
    %99 = vector.extract_strided_slice %7 {offsets = [0, 1536], sizes = [8, 256], strides = [1, 1]} : vector<8x2048xf32> to vector<8x256xf32>
    %cst_25 = arith.constant dense<0.000000e+00> : vector<8xf32>
    %100 = vector.multi_reduction <add>, %99, %cst_25 [1] : vector<8x256xf32> to vector<8xf32>
    %101 = vector.shape_cast %100 : vector<8xf32> to vector<8x1xf32>
    %102 = vector.broadcast %101 : vector<8x1xf32> to vector<8x8xf32>
    %103 = arith.mulf %102, %12 : vector<8x8xf32>
    %cst_26 = arith.constant dense<0.000000e+00> : vector<8xf32>
    %104 = vector.multi_reduction <add>, %103, %cst_26 [0] : vector<8x8xf32> to vector<8xf32>
    %105 = vector.shape_cast %104 : vector<8xf32> to vector<1x8xf32>
    %c6_i32 = arith.constant 6 : i32
    %106 = vector.broadcast %c6_i32 : i32 to vector<8x8xi32>
    %107 = arith.cmpi eq, %13, %106 : vector<8x8xi32>
    %cst_27 = arith.constant 0.000000e+00 : f32
    %108 = vector.shape_cast %105 : vector<1x8xf32> to vector<1x8xf32>
    %109 = vector.broadcast %108 : vector<1x8xf32> to vector<8x8xf32>
    %110 = vector.broadcast %cst_27 : f32 to vector<8x8xf32>
    %111 = arith.select %107, %109, %110 : vector<8x8xi1>, vector<8x8xf32>
    %112 = arith.addf %98, %111 : vector<8x8xf32>
    %113 = vector.extract_strided_slice %7 {offsets = [0, 1792], sizes = [8, 256], strides = [1, 1]} : vector<8x2048xf32> to vector<8x256xf32>
    %cst_28 = arith.constant dense<0.000000e+00> : vector<8xf32>
    %114 = vector.multi_reduction <add>, %113, %cst_28 [1] : vector<8x256xf32> to vector<8xf32>
    %115 = vector.shape_cast %114 : vector<8xf32> to vector<8x1xf32>
    %116 = vector.broadcast %115 : vector<8x1xf32> to vector<8x8xf32>
    %117 = arith.mulf %116, %12 : vector<8x8xf32>
    %cst_29 = arith.constant dense<0.000000e+00> : vector<8xf32>
    %118 = vector.multi_reduction <add>, %117, %cst_29 [0] : vector<8x8xf32> to vector<8xf32>
    %119 = vector.shape_cast %118 : vector<8xf32> to vector<1x8xf32>
    %c7_i32 = arith.constant 7 : i32
    %120 = vector.broadcast %c7_i32 : i32 to vector<8x8xi32>
    %121 = arith.cmpi eq, %13, %120 : vector<8x8xi32>
    %cst_30 = arith.constant 0.000000e+00 : f32
    %122 = vector.shape_cast %119 : vector<1x8xf32> to vector<1x8xf32>
    %123 = vector.broadcast %122 : vector<1x8xf32> to vector<8x8xf32>
    %124 = vector.broadcast %cst_30 : f32 to vector<8x8xf32>
    %125 = arith.select %121, %123, %124 : vector<8x8xi1>, vector<8x8xf32>
    %126 = arith.addf %112, %125 : vector<8x8xf32>
    %cst_31 = arith.constant 3.906250e-03 : f32
    %127 = vector.broadcast %cst_31 : f32 to vector<8x8xf32>
    %128 = arith.mulf %126, %127 : vector<8x8xf32>
    %c0_32 = arith.constant 0 : index
    %c0_33 = arith.constant 0 : index
    %129 = vector.load %arg3[%c0_32, %c0_33] : memref<8x1024xf32, #tpu.memory_space<vmem>>, vector<8x1024xf32>
    %cst_34 = arith.constant dense<0.000000e+00> : vector<8x1024xf32>
    %130 = tpu.matmul %128, %129, %cst_34 {dimension_numbers = #tpu.dot_dimension_numbers<[1], [0], [0], [1], [0, 0, 1, 1], [], []>} : vector<8x8xf32>, vector<8x1024xf32>, vector<8x1024xf32> -> vector<8x1024xf32>
    %c0_35 = arith.constant 0 : index
    %c0_36 = arith.constant 0 : index
    %131 = vector.load %arg4[%c0_35, %c0_36] : memref<1x1024xf32, #tpu.memory_space<vmem>>, vector<1x1024xf32>
    %132 = vector.broadcast %131 : vector<1x1024xf32> to vector<8x1024xf32>
    %133 = arith.addf %130, %132 : vector<8x1024xf32>
    %134 = arith.truncf %133 : vector<8x1024xf32> to vector<8x1024xbf16>
    %c0_37 = arith.constant 0 : index
    %c0_38 = arith.constant 0 : index
    %135 = vector.load %arg5[%c0_37, %c0_38] : memref<1024x72xbf16, #tpu.memory_space<vmem>>, vector<1024x72xbf16>
    %cst_39 = arith.constant dense<0.000000e+00> : vector<8x72xf32>
    %136 = tpu.matmul %134, %135, %cst_39 {dimension_numbers = #tpu.dot_dimension_numbers<[1], [0], [0], [1], [0, 0, 1, 1], [], []>} : vector<8x1024xbf16>, vector<1024x72xbf16>, vector<8x72xf32> -> vector<8x72xf32>
    %137 = vector.extract_strided_slice %136 {offsets = [0, 0], sizes = [8, 64], strides = [1, 1]} : vector<8x72xf32> to vector<8x64xf32>
    %c0_40 = arith.constant 0 : index
    %c0_41 = arith.constant 0 : index
    %138 = vector.load %arg6[%c0_40, %c0_41] : memref<1x64xf32, #tpu.memory_space<vmem>>, vector<1x64xf32>
    %139 = vector.broadcast %138 : vector<1x64xf32> to vector<8x64xf32>
    %140 = arith.addf %137, %139 : vector<8x64xf32>
    %141 = math.tanh %140 : vector<8x64xf32>
    %142 = vector.extract_strided_slice %136 {offsets = [0, 64], sizes = [8, 8], strides = [1, 1]} : vector<8x72xf32> to vector<8x8xf32>
    %c0_42 = arith.constant 0 : index
    %c0_43 = arith.constant 0 : index
    %143 = vector.load %arg7[%c0_42, %c0_43] : memref<1x64xf32, #tpu.memory_space<vmem>>, vector<1x64xf32>
    %144 = vector.broadcast %143 : vector<1x64xf32> to vector<8x64xf32>
    %145 = arith.mulf %141, %144 : vector<8x64xf32>
    %cst_44 = arith.constant dense<0.000000e+00> : vector<8xf32>
    %146 = vector.multi_reduction <add>, %145, %cst_44 [1] : vector<8x64xf32> to vector<8xf32>
    %147 = vector.shape_cast %146 : vector<8xf32> to vector<8x1xf32>
    %c0_45 = arith.constant 0 : index
    %c0_46 = arith.constant 0 : index
    %148 = vector.load %arg8[%c0_45, %c0_46] : memref<1x1xf32, #tpu.memory_space<vmem>>, vector<1x1xf32>
    %149 = vector.broadcast %148 : vector<1x1xf32> to vector<8x1xf32>
    %150 = arith.addf %147, %149 : vector<8x1xf32>
    %cst_47 = arith.constant dense<0xFF800000> : vector<1xf32>
    %151 = vector.multi_reduction <maximumf>, %150, %cst_47 [0] : vector<8x1xf32> to vector<1xf32>
    %152 = vector.shape_cast %151 : vector<1xf32> to vector<1x1xf32>
    %153 = vector.broadcast %152 : vector<1x1xf32> to vector<8x1xf32>
    %154 = arith.subf %150, %153 : vector<8x1xf32>
    %155 = math.exp %154 : vector<8x1xf32>
    %cst_48 = arith.constant dense<0.000000e+00> : vector<1xf32>
    %156 = vector.multi_reduction <add>, %155, %cst_48 [0] : vector<8x1xf32> to vector<1xf32>
    %157 = vector.shape_cast %156 : vector<1xf32> to vector<1x1xf32>
    %158 = vector.broadcast %157 : vector<1x1xf32> to vector<8x1xf32>
    %159 = arith.divf %155, %158 : vector<8x1xf32>
    %160 = vector.broadcast %159 : vector<8x1xf32> to vector<8x8xf32>
    %161 = arith.mulf %160, %142 : vector<8x8xf32>
    %cst_49 = arith.constant dense<0.000000e+00> : vector<8xf32>
    %162 = vector.multi_reduction <add>, %161, %cst_49 [0] : vector<8x8xf32> to vector<8xf32>
    %163 = vector.shape_cast %162 : vector<8xf32> to vector<1x8xf32>
    %c0_50 = arith.constant 0 : index
    %c0_51 = arith.constant 0 : index
    %164 = vector.load %arg9[%c0_50, %c0_51] : memref<1x8xf32, #tpu.memory_space<vmem>>, vector<1x8xf32>
    %165 = arith.addf %163, %164 : vector<1x8xf32>
    %cst_52 = arith.constant dense<0xFF800000> : vector<1xf32>
    %166 = vector.multi_reduction <maximumf>, %165, %cst_52 [1] : vector<1x8xf32> to vector<1xf32>
    %167 = vector.shape_cast %166 : vector<1xf32> to vector<1x1xf32>
    %168 = vector.broadcast %167 : vector<1x1xf32> to vector<1x8xf32>
    %169 = arith.subf %165, %168 : vector<1x8xf32>
    %170 = math.exp %169 : vector<1x8xf32>
    %cst_53 = arith.constant dense<0.000000e+00> : vector<1xf32>
    %171 = vector.multi_reduction <add>, %170, %cst_53 [1] : vector<1x8xf32> to vector<1xf32>
    %172 = vector.shape_cast %171 : vector<1xf32> to vector<1x1xf32>
    %173 = vector.broadcast %172 : vector<1x1xf32> to vector<1x8xf32>
    %174 = arith.divf %170, %173 : vector<1x8xf32>
    %175 = tpu.iota {dimensions = array<i32: 0>} : vector<8x8xi32>
    %176 = tpu.iota {dimensions = array<i32: 1>} : vector<8x8xi32>
    %177 = arith.cmpi eq, %175, %176 : vector<8x8xi32>
    %178 = arith.extui %177 : vector<8x8xi1> to vector<8x8xi32>
    %179 = arith.sitofp %178 : vector<8x8xi32> to vector<8x8xf32>
    %180 = vector.broadcast %159 : vector<8x1xf32> to vector<8x8xf32>
    %181 = arith.mulf %180, %179 : vector<8x8xf32>
    %cst_54 = arith.constant dense<0.000000e+00> : vector<8xf32>
    %182 = vector.multi_reduction <add>, %181, %cst_54 [0] : vector<8x8xf32> to vector<8xf32>
    %183 = vector.shape_cast %182 : vector<8xf32> to vector<1x8xf32>
    %184 = tpu.iota {dimensions = array<i32: 0>} : vector<2x8xi32>
    %c0_i32_55 = arith.constant 0 : i32
    %185 = vector.broadcast %c0_i32_55 : i32 to vector<2x8xi32>
    %186 = arith.cmpi eq, %184, %185 : vector<2x8xi32>
    %187 = vector.shape_cast %174 : vector<1x8xf32> to vector<1x8xf32>
    %188 = vector.broadcast %187 : vector<1x8xf32> to vector<2x8xf32>
    %189 = vector.shape_cast %183 : vector<1x8xf32> to vector<1x8xf32>
    %190 = vector.broadcast %189 : vector<1x8xf32> to vector<2x8xf32>
    %191 = arith.select %186, %188, %190 : vector<2x8xi1>, vector<2x8xf32>
    %c0_56 = arith.constant 0 : index
    %c0_57 = arith.constant 0 : index
    %192 = vector.load %arg10[%c0_56, %c0_57] : memref<2x8xf32, #tpu.memory_space<vmem>>, vector<2x8xf32>
    tpu.vector_store %arg10[%c0_56, %c0_57], %191 {strides = array<i32>} : memref<2x8xf32, #tpu.memory_space<vmem>>, vector<2x8xf32>,
    return
  }
}

</mosaic_0001>

<llo_original>
// kernel: attention_modern_multi_forward.1
$region0: #{attention_modern_multi_forward.1}
  #allocation0 [shape = 'u32[]', space=smem, size = 0x4, offset = 0x4, fixed_abs, tag = 'smem constant byte address 0x4 - core index']
  #allocation1 [shape = 'u32[72,128]{1,0:T(1,128)}', space=vmem, size = 0x9000, scoped, tag = 'internal scratch']
  #allocation2 [shape = 'f32[1,1]{1,0:T(1,128)S(1)}', space=vmem, size = 0x200, scoped, tag = 'scoped memory for attention_modern_multi_forward.1']
  %s0 = inlined_call_operand.vmem [shape: bf16[36,2048], index: 0, kind: input, shape index: {}]
  %s1 = inlined_call_operand.vmem [shape: bf16[8,36], index: 1, kind: input, shape index: {}]
  %s2 = inlined_call_operand.vmem [shape: f32[8,1], index: 2, kind: input, shape index: {}]
  %s3 = inlined_call_operand.vmem [shape: f32[8,1024], index: 3, kind: input, shape index: {}]
  %s4 = inlined_call_operand.vmem [shape: f32[1,1024], index: 4, kind: input, shape index: {}]
  %s5 = inlined_call_operand.vmem [shape: bf16[1024,72], index: 5, kind: input, shape index: {}]
  %s6 = inlined_call_operand.vmem [shape: f32[1,64], index: 6, kind: input, shape index: {}]
  %s7 = inlined_call_operand.vmem [shape: f32[1,64], index: 7, kind: input, shape index: {}]
  %s8 = inlined_call_operand.<no memory space> [shape: f32[1,1], index: 8, kind: input, shape index: {}]
  %s9 = inlined_call_operand.vmem [shape: f32[1,8], index: 9, kind: input, shape index: {}]
  %s10 = inlined_call_operand.vmem [shape: f32[2,8], index: 10, kind: output, shape index: {}]
  %s11 = sld [smem:[#allocation0]]
  $region50: #{attention_modern_multi_forward.1} parent=0
    _
  %s13 = ssub.s32 1, %s11
  %s14 = scalar_select 0, %s13, %s11
  %v15 = vstv %s8
  %16 = vst [vmem:[#allocation2] sm:$0x1] %v15
  // Predicated region
  $region2: #{attention_modern_multi_forward.1} parent=0 // pred_check
    _
  $region3: #{attention_modern_multi_forward.1} parent=0 // pred_check_branch
    %18 = sbr.rel (0) target = $region5
  $region4: #{attention_modern_multi_forward.1} parent=0 // pred_region
    _
  $region5: #{attention_modern_multi_forward.1} parent=0 // pred_fallthru
    _
  // Predicated region
  $region6: #{attention_modern_multi_forward.1} parent=0 // pred_check
    _
  $region7: #{attention_modern_multi_forward.1} parent=0 // pred_check_branch
    %20 = sbr.rel (0) target = $region9
  $region8: #{attention_modern_multi_forward.1} parent=0 // pred_region
    _
  $region9: #{attention_modern_multi_forward.1} parent=0 // pred_fallthru
    _
  // Predicated region
  $region10: #{attention_modern_multi_forward.1} parent=0 // pred_check
    _
  $region11: #{attention_modern_multi_forward.1} parent=0 // pred_check_branch
    %22 = sbr.rel (0) target = $region13
  $region12: #{attention_modern_multi_forward.1} parent=0 // pred_region
    _
  $region13: #{attention_modern_multi_forward.1} parent=0 // pred_fallthru
    _
  // Predicated region
  $region14: #{attention_modern_multi_forward.1} parent=0 // pred_check
    _
  $region15: #{attention_modern_multi_forward.1} parent=0 // pred_check_branch
    %24 = sbr.rel (0) target = $region17
  $region16: #{attention_modern_multi_forward.1} parent=0 // pred_region
    _
  $region17: #{attention_modern_multi_forward.1} parent=0 // pred_fallthru
    _
  // Predicated region
  $region18: #{attention_modern_multi_forward.1} parent=0 // pred_check
    _
  $region19: #{attention_modern_multi_forward.1} parent=0 // pred_check_branch
    %26 = sbr.rel (0) target = $region21
  $region20: #{attention_modern_multi_forward.1} parent=0 // pred_region
    _
  $region21: #{attention_modern_multi_forward.1} parent=0 // pred_fallthru
    _
  // Predicated region
  $region22: #{attention_modern_multi_forward.1} parent=0 // pred_check
    _
  $region23: #{attention_modern_multi_forward.1} parent=0 // pred_check_branch
    %28 = sbr.rel (0) target = $region25
  $region24: #{attention_modern_multi_forward.1} parent=0 // pred_region
    _
  $region25: #{attention_modern_multi_forward.1} parent=0 // pred_fallthru
    _
  // Predicated region
  $region26: #{attention_modern_multi_forward.1} parent=0 // pred_check
    _
  $region27: #{attention_modern_multi_forward.1} parent=0 // pred_check_branch
    %30 = sbr.rel (0) target = $region29
  $region28: #{attention_modern_multi_forward.1} parent=0 // pred_region
    _
  $region29: #{attention_modern_multi_forward.1} parent=0 // pred_fallthru
    _
  // Predicated region
  $region30: #{attention_modern_multi_forward.1} parent=0 // pred_check
    _
  $region31: #{attention_modern_multi_forward.1} parent=0 // pred_check_branch
    %32 = sbr.rel (0) target = $region33
  $region32: #{attention_modern_multi_forward.1} parent=0 // pred_region
    _
  $region33: #{attention_modern_multi_forward.1} parent=0 // pred_fallthru
    _
  // Predicated region
  $region34: #{attention_modern_multi_forward.1} parent=0 // pred_check
    _
  $region35: #{attention_modern_multi_forward.1} parent=0 // pred_check_branch
    %34 = sbr.rel (0) target = $region37
  $region36: #{attention_modern_multi_forward.1} parent=0 // pred_region
    _
  $region37: #{attention_modern_multi_forward.1} parent=0 // pred_fallthru
    _
  // Predicated region
  $region38: #{attention_modern_multi_forward.1} parent=0 // pred_check
    _
  $region39: #{attention_modern_multi_forward.1} parent=0 // pred_check_branch
    %36 = sbr.rel (0) target = $region41
  $region40: #{attention_modern_multi_forward.1} parent=0 // pred_region
    _
  $region41: #{attention_modern_multi_forward.1} parent=0 // pred_fallthru
    _
  %v38 = vld [vmem:[%s1] sm:$0xf]
  %v39 = vld [vmem:[%s0] sm:$0xff]
  %v40 = vld [vmem:[%s0 + $0x8] sm:$0xff]
  %v41 = vld [vmem:[%s0 + $0x10] sm:$0xff]
  %v42 = vld [vmem:[%s0 + $0x18] sm:$0xff]
  %v43 = vld [vmem:[%s0 + $0x20] sm:$0xff]
  %v44 = vld [vmem:[%s0 + $0x28] sm:$0xff]
  %v45 = vld [vmem:[%s0 + $0x30] sm:$0xff]
  %v46 = vld [vmem:[%s0 + $0x38] sm:$0xff]
  %v47 = vld [vmem:[%s0 + $0x40] sm:$0xff]
  %v48 = vld [vmem:[%s0 + $0x48] sm:$0xff]
  %v49 = vld [vmem:[%s0 + $0x50] sm:$0xff]
  %v50 = vld [vmem:[%s0 + $0x58] sm:$0xff]
  %v51 = vld [vmem:[%s0 + $0x60] sm:$0xff]
  %v52 = vld [vmem:[%s0 + $0x68] sm:$0xff]
  %v53 = vld [vmem:[%s0 + $0x70] sm:$0xff]
  %v54 = vld [vmem:[%s0 + $0x78] sm:$0xff]
  %v55 = vld [vmem:[%s0 + $0x80] sm:$0xff]
  %v56 = vld [vmem:[%s0 + $0x88] sm:$0xff]
  %v57 = vld [vmem:[%s0 + $0x90] sm:$0xff]
  %v58 = vld [vmem:[%s0 + $0x98] sm:$0xff]
  %v59 = vld [vmem:[%s0 + $0xa0] sm:$0xff]
  %v60 = vld [vmem:[%s0 + $0xa8] sm:$0xff]
  %v61 = vld [vmem:[%s0 + $0xb0] sm:$0xff]
  %v62 = vld [vmem:[%s0 + $0xb8] sm:$0xff]
  %v63 = vld [vmem:[%s0 + $0xc0] sm:$0xff]
  %v64 = vld [vmem:[%s0 + $0xc8] sm:$0xff]
  %v65 = vld [vmem:[%s0 + $0xd0] sm:$0xff]
  %v66 = vld [vmem:[%s0 + $0xd8] sm:$0xff]
  %v67 = vld [vmem:[%s0 + $0xe0] sm:$0xff]
  %v68 = vld [vmem:[%s0 + $0xe8] sm:$0xff]
  %v69 = vld [vmem:[%s0 + $0xf0] sm:$0xff]
  %v70 = vld [vmem:[%s0 + $0xf8] sm:$0xff]
  %v71 = vld [vmem:[%s0 + $0x100] sm:$0x33]
  %v72 = vld [vmem:[%s0 + $0x108] sm:$0x33]
  %v73 = vld [vmem:[%s0 + $0x110] sm:$0x33]
  %v74 = vld [vmem:[%s0 + $0x118] sm:$0x33]
  %v75 = vld [vmem:[%s0 + $0x120] sm:$0x33]
  %v76 = vld [vmem:[%s0 + $0x128] sm:$0x33]
  %v77 = vld [vmem:[%s0 + $0x130] sm:$0x33]
  %v78 = vld [vmem:[%s0 + $0x138] sm:$0x33]
  %v79 = vld [vmem:[%s2] sm:$0xff]
  %81 = vset.pattern.permute.xlu0 0
  %82 = vperm.xlu0 %81, %v79
  %v83 = vpop.permute.xlu0 %82
  %v125 = vunpack.c.l.b16 %v39
  %v126 = vunpack.c.h.b16 %v39
  %v127 = vunpack.c.l.b16 %v40
  %v128 = vunpack.c.h.b16 %v40
  %v129 = vunpack.c.l.b16 %v41
  %v130 = vunpack.c.h.b16 %v41
  %v131 = vunpack.c.l.b16 %v42
  %v132 = vunpack.c.h.b16 %v42
  %v133 = vunpack.c.l.b16 %v43
  %v134 = vunpack.c.h.b16 %v43
  %v135 = vunpack.c.l.b16 %v44
  %v136 = vunpack.c.h.b16 %v44
  %v137 = vunpack.c.l.b16 %v45
  %v138 = vunpack.c.h.b16 %v45
  %v139 = vunpack.c.l.b16 %v46
  %v140 = vunpack.c.h.b16 %v46
  %v141 = vunpack.c.l.b16 %v47
  %v142 = vunpack.c.h.b16 %v47
  %v143 = vunpack.c.l.b16 %v48
  %v144 = vunpack.c.h.b16 %v48
  %v145 = vunpack.c.l.b16 %v49
  %v146 = vunpack.c.h.b16 %v49
  %v147 = vunpack.c.l.b16 %v50
  %v148 = vunpack.c.h.b16 %v50
  %v149 = vunpack.c.l.b16 %v51
  %v150 = vunpack.c.h.b16 %v51
  %v151 = vunpack.c.l.b16 %v52
  %v152 = vunpack.c.h.b16 %v52
  %v153 = vunpack.c.l.b16 %v53
  %v154 = vunpack.c.h.b16 %v53
  %v155 = vunpack.c.l.b16 %v54
  %v156 = vunpack.c.h.b16 %v54
  %v157 = vunpack.c.l.b16 %v55
  %v158 = vunpack.c.h.b16 %v55
  %v159 = vunpack.c.l.b16 %v56
  %v160 = vunpack.c.h.b16 %v56
  %v161 = vunpack.c.l.b16 %v57
  %v162 = vunpack.c.h.b16 %v57
  %v163 = vunpack.c.l.b16 %v58
  %v164 = vunpack.c.h.b16 %v58
  %v165 = vunpack.c.l.b16 %v59
  %v166 = vunpack.c.h.b16 %v59
  %v167 = vunpack.c.l.b16 %v60
  %v168 = vunpack.c.h.b16 %v60
  %v169 = vunpack.c.l.b16 %v61
  %v170 = vunpack.c.h.b16 %v61
  %v171 = vunpack.c.l.b16 %v62
  %v172 = vunpack.c.h.b16 %v62
  %v173 = vunpack.c.l.b16 %v63
  %v174 = vunpack.c.h.b16 %v63
  %v175 = vunpack.c.l.b16 %v64
  %v176 = vunpack.c.h.b16 %v64
  %v177 = vunpack.c.l.b16 %v65
  %v178 = vunpack.c.h.b16 %v65
  %v179 = vunpack.c.l.b16 %v66
  %v180 = vunpack.c.h.b16 %v66
  %v181 = vunpack.c.l.b16 %v67
  %v182 = vunpack.c.h.b16 %v67
  %v183 = vunpack.c.l.b16 %v68
  %v184 = vunpack.c.h.b16 %v68
  %v185 = vunpack.c.l.b16 %v69
  %v186 = vunpack.c.h.b16 %v69
  %v187 = vunpack.c.l.b16 %v70
  %v188 = vunpack.c.h.b16 %v70
  %v189 = vunpack.c.l.b16 %v71
  %v190 = vunpack.c.h.b16 %v71
  %v191 = vunpack.c.l.b16 %v72
  %v192 = vunpack.c.h.b16 %v72
  %v193 = vunpack.c.l.b16 %v73
  %v194 = vunpack.c.h.b16 %v73
  %v195 = vunpack.c.l.b16 %v74
  %v196 = vunpack.c.h.b16 %v74
  %v197 = vunpack.c.l.b16 %v75
  %v198 = vunpack.c.h.b16 %v75
  %v199 = vunpack.c.l.b16 %v76
  %v200 = vunpack.c.h.b16 %v76
  %v201 = vunpack.c.l.b16 %v77
  %v202 = vunpack.c.h.b16 %v77
  %v203 = vunpack.c.l.b16 %v78
  %v204 = vunpack.c.h.b16 %v78
  %v205 = vpack.c.b16 %v141, %v125
  %v206 = vpack.c.b16 %v142, %v126
  %v207 = vpack.c.b16 %v143, %v127
  %v208 = vpack.c.b16 %v144, %v128
  %v209 = vpack.c.b16 %v145, %v129
  %v210 = vpack.c.b16 %v146, %v130
  %v211 = vpack.c.b16 %v147, %v131
  %v212 = vpack.c.b16 %v148, %v132
  %v213 = vpack.c.b16 %v149, %v133
  %v214 = vpack.c.b16 %v150, %v134
  %v215 = vpack.c.b16 %v151, %v135
  %v216 = vpack.c.b16 %v152, %v136
  %v217 = vpack.c.b16 %v153, %v137
  %v218 = vpack.c.b16 %v154, %v138
  %v219 = vpack.c.b16 %v155, %v139
  %v220 = vpack.c.b16 %v156, %v140
  %v221 = vpack.c.b16 %v173, %v157
  %v222 = vpack.c.b16 %v174, %v158
  %v223 = vpack.c.b16 %v175, %v159
  %v224 = vpack.c.b16 %v176, %v160
  %v225 = vpack.c.b16 %v177, %v161
  %v226 = vpack.c.b16 %v178, %v162
  %v227 = vpack.c.b16 %v179, %v163
  %v228 = vpack.c.b16 %v180, %v164
  %v229 = vpack.c.b16 %v181, %v165
  %v230 = vpack.c.b16 %v182, %v166
  %v231 = vpack.c.b16 %v183, %v167
  %v232 = vpack.c.b16 %v184, %v168
  %v233 = vpack.c.b16 %v185, %v169
  %v234 = vpack.c.b16 %v186, %v170
  %v235 = vpack.c.b16 %v187, %v171
  %v236 = vpack.c.b16 %v188, %v172
  %v237 = vpack.c.b16 %v189, %v189
  %v238 = vpack.c.b16 %v190, %v190
  %v239 = vpack.c.b16 %v191, %v191
  %v240 = vpack.c.b16 %v192, %v192
  %v241 = vpack.c.b16 %v193, %v193
  %v242 = vpack.c.b16 %v194, %v194
  %v243 = vpack.c.b16 %v195, %v195
  %v244 = vpack.c.b16 %v196, %v196
  %v245 = vpack.c.b16 %v197, %v197
  %v246 = vpack.c.b16 %v198, %v198
  %v247 = vpack.c.b16 %v199, %v199
  %v248 = vpack.c.b16 %v200, %v200
  %v249 = vpack.c.b16 %v201, %v201
  %v250 = vpack.c.b16 %v202, %v202
  %v251 = vpack.c.b16 %v203, %v203
  %v252 = vpack.c.b16 %v204, %v204
  %vm285 = vcmask 293888
  %v287 = vsel %vm285, %v38, 0
  %vm289 = vcmask 1041408
  %v291 = vsel %vm289, %v237, 0
  %v294 = vsel %vm289, %v238, 0
  %v297 = vsel %vm289, %v239, 0
  %v300 = vsel %vm289, %v240, 0
  %v303 = vsel %vm289, %v241, 0
  %v306 = vsel %vm289, %v242, 0
  %v309 = vsel %vm289, %v243, 0
  %v312 = vsel %vm289, %v244, 0
  %v315 = vsel %vm289, %v245, 0
  %v318 = vsel %vm289, %v246, 0
  %v321 = vsel %vm289, %v247, 0
  %v324 = vsel %vm289, %v248, 0
  %v327 = vsel %vm289, %v249, 0
  %v330 = vsel %vm289, %v250, 0
  %v333 = vsel %vm289, %v251, 0
  %v336 = vsel %vm289, %v252, 0
  %338 = vmatpush.bf16.msra.mxu0 0
  %339 = vmatpush.bf16.msra.mxu0 0
  %340 = vmatpush.bf16.msra.mxu0 0
  %341 = vmatpush.bf16.msra.mxu0 0
  %342 = vmatpush.bf16.msra.mxu0 0
  %343 = vmatpush.bf16.msra.mxu0 %v291
  %344 = vmatpush.bf16.msra.mxu0 %v221
  %345 = vmatpush.bf16.msra.mxu0 %v205
  %346 = vmatmul.bf16.gmra.mxu0 %v287
  %v347 = vpop.f32.mrf.mxu0
  %v348 = vadd.f32 %v83, %v347
  %v349 = vpop.f32.mrf.mxu0
  %350 = vdwg.mxu0
  %351 = vmatpush.bf16.msra.mxu0 0
  %352 = vmatpush.bf16.msra.mxu0 0
  %353 = vmatpush.bf16.msra.mxu0 0
  %354 = vmatpush.bf16.msra.mxu0 0
  %355 = vmatpush.bf16.msra.mxu0 0
  %356 = vmatpush.bf16.msra.mxu0 %v294
  %357 = vmatpush.bf16.msra.mxu0 %v222
  %358 = vmatpush.bf16.msra.mxu0 %v206
  %359 = vmatmul.bf16.gmra.mxu0 %v287
  %v360 = vpop.f32.mrf.mxu0
  %v361 = vadd.f32 %v83, %v360
  %v362 = vpop.f32.mrf.mxu0
  %363 = vdwg.mxu0
  %364 = vmatpush.bf16.msra.mxu0 0
  %365 = vmatpush.bf16.msra.mxu0 0
  %366 = vmatpush.bf16.msra.mxu0 0
  %367 = vmatpush.bf16.msra.mxu0 0
  %368 = vmatpush.bf16.msra.mxu0 0
  %369 = vmatpush.bf16.msra.mxu0 %v297
  %370 = vmatpush.bf16.msra.mxu0 %v223
  %371 = vmatpush.bf16.msra.mxu0 %v207
  %372 = vmatmul.bf16.gmra.mxu0 %v287
  %v373 = vpop.f32.mrf.mxu0
  %v374 = vadd.f32 %v83, %v373
  %v375 = vpop.f32.mrf.mxu0
  %376 = vdwg.mxu0
  %377 = vmatpush.bf16.msra.mxu0 0
  %378 = vmatpush.bf16.msra.mxu0 0
  %379 = vmatpush.bf16.msra.mxu0 0
  %380 = vmatpush.bf16.msra.mxu0 0
  %381 = vmatpush.bf16.msra.mxu0 0
  %382 = vmatpush.bf16.msra.mxu0 %v300
  %383 = vmatpush.bf16.msra.mxu0 %v224
  %384 = vmatpush.bf16.msra.mxu0 %v208
  %385 = vmatmul.bf16.gmra.mxu0 %v287
  %v386 = vpop.f32.mrf.mxu0
  %v387 = vadd.f32 %v83, %v386
  %v388 = vpop.f32.mrf.mxu0
  %389 = vdwg.mxu0
  %390 = vmatpush.bf16.msra.mxu0 0
  %391 = vmatpush.bf16.msra.mxu0 0
  %392 = vmatpush.bf16.msra.mxu0 0
  %393 = vmatpush.bf16.msra.mxu0 0
  %394 = vmatpush.bf16.msra.mxu0 0
  %395 = vmatpush.bf16.msra.mxu0 %v303
  %396 = vmatpush.bf16.msra.mxu0 %v225
  %397 = vmatpush.bf16.msra.mxu0 %v209
  %398 = vmatmul.bf16.gmra.mxu0 %v287
  %v399 = vpop.f32.mrf.mxu0
  %v400 = vadd.f32 %v83, %v399
  %v401 = vpop.f32.mrf.mxu0
  %402 = vdwg.mxu0
  %403 = vmatpush.bf16.msra.mxu0 0
  %404 = vmatpush.bf16.msra.mxu0 0
  %405 = vmatpush.bf16.msra.mxu0 0
  %406 = vmatpush.bf16.msra.mxu0 0
  %407 = vmatpush.bf16.msra.mxu0 0
  %408 = vmatpush.bf16.msra.mxu0 %v306
  %409 = vmatpush.bf16.msra.mxu0 %v226
  %410 = vmatpush.bf16.msra.mxu0 %v210
  %411 = vmatmul.bf16.gmra.mxu0 %v287
  %v412 = vpop.f32.mrf.mxu0
  %v413 = vadd.f32 %v83, %v412
  %v414 = vpop.f32.mrf.mxu0
  %415 = vdwg.mxu0
  %416 = vmatpush.bf16.msra.mxu0 0
  %417 = vmatpush.bf16.msra.mxu0 0
  %418 = vmatpush.bf16.msra.mxu0 0
  %419 = vmatpush.bf16.msra.mxu0 0
  %420 = vmatpush.bf16.msra.mxu0 0
  %421 = vmatpush.bf16.msra.mxu0 %v309
  %422 = vmatpush.bf16.msra.mxu0 %v227
  %423 = vmatpush.bf16.msra.mxu0 %v211
  %424 = vmatmul.bf16.gmra.mxu0 %v287
  %v425 = vpop.f32.mrf.mxu0
  %v426 = vadd.f32 %v83, %v425
  %v427 = vpop.f32.mrf.mxu0
  %428 = vdwg.mxu0
  %429 = vmatpush.bf16.msra.mxu0 0
  %430 = vmatpush.bf16.msra.mxu0 0
  %431 = vmatpush.bf16.msra.mxu0 0
  %432 = vmatpush.bf16.msra.mxu0 0
  %433 = vmatpush.bf16.msra.mxu0 0
  %434 = vmatpush.bf16.msra.mxu0 %v312
  %435 = vmatpush.bf16.msra.mxu0 %v228
  %436 = vmatpush.bf16.msra.mxu0 %v212
  %437 = vmatmul.bf16.gmra.mxu0 %v287
  %v438 = vpop.f32.mrf.mxu0
  %v439 = vadd.f32 %v83, %v438
  %v440 = vpop.f32.mrf.mxu0
  %441 = vdwg.mxu0
  %442 = vmatpush.bf16.msra.mxu0 0
  %443 = vmatpush.bf16.msra.mxu0 0
  %444 = vmatpush.bf16.msra.mxu0 0
  %445 = vmatpush.bf16.msra.mxu0 0
  %446 = vmatpush.bf16.msra.mxu0 0
  %447 = vmatpush.bf16.msra.mxu0 %v315
  %448 = vmatpush.bf16.msra.mxu0 %v229
  %449 = vmatpush.bf16.msra.mxu0 %v213
  %450 = vmatmul.bf16.gmra.mxu0 %v287
  %v451 = vpop.f32.mrf.mxu0
  %v452 = vadd.f32 %v83, %v451
  %v453 = vpop.f32.mrf.mxu0
  %454 = vdwg.mxu0
  %455 = vmatpush.bf16.msra.mxu0 0
  %456 = vmatpush.bf16.msra.mxu0 0
  %457 = vmatpush.bf16.msra.mxu0 0
  %458 = vmatpush.bf16.msra.mxu0 0
  %459 = vmatpush.bf16.msra.mxu0 0
  %460 = vmatpush.bf16.msra.mxu0 %v318
  %461 = vmatpush.bf16.msra.mxu0 %v230
  %462 = vmatpush.bf16.msra.mxu0 %v214
  %463 = vmatmul.bf16.gmra.mxu0 %v287
  %v464 = vpop.f32.mrf.mxu0
  %v465 = vadd.f32 %v83, %v464
  %v466 = vpop.f32.mrf.mxu0
  %467 = vdwg.mxu0
  %468 = vmatpush.bf16.msra.mxu0 0
  %469 = vmatpush.bf16.msra.mxu0 0
  %470 = vmatpush.bf16.msra.mxu0 0
  %471 = vmatpush.bf16.msra.mxu0 0
  %472 = vmatpush.bf16.msra.mxu0 0
  %473 = vmatpush.bf16.msra.mxu0 %v321
  %474 = vmatpush.bf16.msra.mxu0 %v231
  %475 = vmatpush.bf16.msra.mxu0 %v215
  %476 = vmatmul.bf16.gmra.mxu0 %v287
  %v477 = vpop.f32.mrf.mxu0
  %v478 = vadd.f32 %v83, %v477
  %v479 = vpop.f32.mrf.mxu0
  %480 = vdwg.mxu0
  %481 = vmatpush.bf16.msra.mxu0 0
  %482 = vmatpush.bf16.msra.mxu0 0
  %483 = vmatpush.bf16.msra.mxu0 0
  %484 = vmatpush.bf16.msra.mxu0 0
  %485 = vmatpush.bf16.msra.mxu0 0
  %486 = vmatpush.bf16.msra.mxu0 %v324
  %487 = vmatpush.bf16.msra.mxu0 %v232
  %488 = vmatpush.bf16.msra.mxu0 %v216
  %489 = vmatmul.bf16.gmra.mxu0 %v287
  %v490 = vpop.f32.mrf.mxu0
  %v491 = vadd.f32 %v83, %v490
  %v492 = vpop.f32.mrf.mxu0
  %493 = vdwg.mxu0
  %494 = vmatpush.bf16.msra.mxu0 0
  %495 = vmatpush.bf16.msra.mxu0 0
  %496 = vmatpush.bf16.msra.mxu0 0
  %497 = vmatpush.bf16.msra.mxu0 0
  %498 = vmatpush.bf16.msra.mxu0 0
  %499 = vmatpush.bf16.msra.mxu0 %v327
  %500 = vmatpush.bf16.msra.mxu0 %v233
  %501 = vmatpush.bf16.msra.mxu0 %v217
  %502 = vmatmul.bf16.gmra.mxu0 %v287
  %v503 = vpop.f32.mrf.mxu0
  %v504 = vadd.f32 %v83, %v503
  %v505 = vpop.f32.mrf.mxu0
  %506 = vdwg.mxu0
  %507 = vmatpush.bf16.msra.mxu0 0
  %508 = vmatpush.bf16.msra.mxu0 0
  %509 = vmatpush.bf16.msra.mxu0 0
  %510 = vmatpush.bf16.msra.mxu0 0
  %511 = vmatpush.bf16.msra.mxu0 0
  %512 = vmatpush.bf16.msra.mxu0 %v330
  %513 = vmatpush.bf16.msra.mxu0 %v234
  %514 = vmatpush.bf16.msra.mxu0 %v218
  %515 = vmatmul.bf16.gmra.mxu0 %v287
  %v516 = vpop.f32.mrf.mxu0
  %v517 = vadd.f32 %v83, %v516
  %v518 = vpop.f32.mrf.mxu0
  %519 = vdwg.mxu0
  %520 = vmatpush.bf16.msra.mxu0 0
  %521 = vmatpush.bf16.msra.mxu0 0
  %522 = vmatpush.bf16.msra.mxu0 0
  %523 = vmatpush.bf16.msra.mxu0 0
  %524 = vmatpush.bf16.msra.mxu0 0
  %525 = vmatpush.bf16.msra.mxu0 %v333
  %526 = vmatpush.bf16.msra.mxu0 %v235
  %527 = vmatpush.bf16.msra.mxu0 %v219
  %528 = vmatmul.bf16.gmra.mxu0 %v287
  %v529 = vpop.f32.mrf.mxu0
  %v530 = vadd.f32 %v83, %v529
  %v531 = vpop.f32.mrf.mxu0
  %532 = vdwg.mxu0
  %533 = vmatpush.bf16.msra.mxu0 0
  %534 = vmatpush.bf16.msra.mxu0 0
  %535 = vmatpush.bf16.msra.mxu0 0
  %536 = vmatpush.bf16.msra.mxu0 0
  %537 = vmatpush.bf16.msra.mxu0 0
  %538 = vmatpush.bf16.msra.mxu0 %v336
  %539 = vmatpush.bf16.msra.mxu0 %v236
  %540 = vmatpush.bf16.msra.mxu0 %v220
  %541 = vmatmul.bf16.gmra.mxu0 %v287
  %v542 = vpop.f32.mrf.mxu0
  %v543 = vadd.f32 %v83, %v542
  %v544 = vpop.f32.mrf.mxu0
  %545 = vdwg.mxu0
  %v546 = vmax.f32 %v348, 0.0
  %v547 = vmax.f32 %v361, 0.0
  %v548 = vmax.f32 %v374, 0.0
  %v549 = vmax.f32 %v387, 0.0
  %v550 = vmax.f32 %v400, 0.0
  %v551 = vmax.f32 %v413, 0.0
  %v552 = vmax.f32 %v426, 0.0
  %v553 = vmax.f32 %v439, 0.0
  %v554 = vmax.f32 %v452, 0.0
  %v555 = vmax.f32 %v465, 0.0
  %v556 = vmax.f32 %v478, 0.0
  %v557 = vmax.f32 %v491, 0.0
  %v558 = vmax.f32 %v504, 0.0
  %v559 = vmax.f32 %v517, 0.0
  %v560 = vmax.f32 %v530, 0.0
  %v561 = vmax.f32 %v543, 0.0
  %v562 = vlaneseq
  %v563 = vshrl.u32 %v562, 7
  %v564 = vlaneseq
  %v565 = vand.u32 %v564, 127
  %vm566 = vcmp.eq.s32.totalorder %v563, %v565
  %v567 = vsel %vm566, 1, 0
  %v568 = vcvt.s32.f32 %v567
  %v569 = vadd.f32 %v546, %v547
  %570 = vadd.xlane.f32.xlu0 %v569
  %v571 = vpop.xlane.xlu0 %570
  %v572 = vmul.f32 %v571, %v568
  %vm573 = vcmask 64512
  %v574 = vsel %vm573, %v572, 0.0
  %v575 = vrot.slane %v574, 4
  %v576 = vadd.f32 %v574, %v575
  %v577 = vrot.slane %v576, 2
  %v578 = vadd.f32 %v576, %v577
  %v579 = vrot.slane %v578, 1
  %v580 = vadd.f32 %v578, %v579
  %vm581 = vcmp.eq.s32.totalorder %v563, 0
  %v582 = vsel %vm581, %v580, 0.0
  %v583 = vadd.f32 %v582, 0.0
  %v584 = vadd.f32 %v548, %v549
  %585 = vadd.xlane.f32.xlu0 %v584
  %v586 = vpop.xlane.xlu0 %585
  %v587 = vmul.f32 %v586, %v568
  %v588 = vsel %vm573, %v587, 0.0
  %v589 = vrot.slane %v588, 4
  %v590 = vadd.f32 %v588, %v589
  %v591 = vrot.slane %v590, 2
  %v592 = vadd.f32 %v590, %v591
  %v593 = vrot.slane %v592, 1
  %v594 = vadd.f32 %v592, %v593
  %vm595 = vcmp.eq.s32.totalorder %v563, 1
  %v596 = vsel %vm595, %v594, 0.0
  %v597 = vadd.f32 %v583, %v596
  %v598 = vadd.f32 %v550, %v551
  %599 = vadd.xlane.f32.xlu0 %v598
  %v600 = vpop.xlane.xlu0 %599
  %v601 = vmul.f32 %v600, %v568
  %v602 = vsel %vm573, %v601, 0.0
  %v603 = vrot.slane %v602, 4
  %v604 = vadd.f32 %v602, %v603
  %v605 = vrot.slane %v604, 2
  %v606 = vadd.f32 %v604, %v605
  %v607 = vrot.slane %v606, 1
  %v608 = vadd.f32 %v606, %v607
  %vm609 = vcmp.eq.s32.totalorder %v563, 2
  %v610 = vsel %vm609, %v608, 0.0
  %v611 = vadd.f32 %v597, %v610
  %v612 = vadd.f32 %v552, %v553
  %613 = vadd.xlane.f32.xlu0 %v612
  %v614 = vpop.xlane.xlu0 %613
  %v615 = vmul.f32 %v614, %v568
  %v616 = vsel %vm573, %v615, 0.0
  %v617 = vrot.slane %v616, 4
  %v618 = vadd.f32 %v616, %v617
  %v619 = vrot.slane %v618, 2
  %v620 = vadd.f32 %v618, %v619
  %v621 = vrot.slane %v620, 1
  %v622 = vadd.f32 %v620, %v621
  %vm623 = vcmp.eq.s32.totalorder %v563, 3
  %v624 = vsel %vm623, %v622, 0.0
  %v625 = vadd.f32 %v611, %v624
  %v626 = vadd.f32 %v554, %v555
  %627 = vadd.xlane.f32.xlu0 %v626
  %v628 = vpop.xlane.xlu0 %627
  %v629 = vmul.f32 %v628, %v568
  %v630 = vsel %vm573, %v629, 0.0
  %v631 = vrot.slane %v630, 4
  %v632 = vadd.f32 %v630, %v631
  %v633 = vrot.slane %v632, 2
  %v634 = vadd.f32 %v632, %v633
  %v635 = vrot.slane %v634, 1
  %v636 = vadd.f32 %v634, %v635
  %vm637 = vcmp.eq.s32.totalorder %v563, 4
  %v638 = vsel %vm637, %v636, 0.0
  %v639 = vadd.f32 %v625, %v638
  %v640 = vadd.f32 %v556, %v557
  %641 = vadd.xlane.f32.xlu0 %v640
  %v642 = vpop.xlane.xlu0 %641
  %v643 = vmul.f32 %v642, %v568
  %v644 = vsel %vm573, %v643, 0.0
  %v645 = vrot.slane %v644, 4
  %v646 = vadd.f32 %v644, %v645
  %v647 = vrot.slane %v646, 2
  %v648 = vadd.f32 %v646, %v647
  %v649 = vrot.slane %v648, 1
  %v650 = vadd.f32 %v648, %v649
  %vm651 = vcmp.eq.s32.totalorder %v563, 5
  %v652 = vsel %vm651, %v650, 0.0
  %v653 = vadd.f32 %v639, %v652
  %v654 = vadd.f32 %v558, %v559
  %655 = vadd.xlane.f32.xlu0 %v654
  %v656 = vpop.xlane.xlu0 %655
  %v657 = vmul.f32 %v656, %v568
  %v658 = vsel %vm573, %v657, 0.0
  %v659 = vrot.slane %v658, 4
  %v660 = vadd.f32 %v658, %v659
  %v661 = vrot.slane %v660, 2
  %v662 = vadd.f32 %v660, %v661
  %v663 = vrot.slane %v662, 1
  %v664 = vadd.f32 %v662, %v663
  %vm665 = vcmp.eq.s32.totalorder %v563, 6
  %v666 = vsel %vm665, %v664, 0.0
  %v667 = vadd.f32 %v653, %v666
  %v668 = vadd.f32 %v560, %v561
  %669 = vadd.xlane.f32.xlu0 %v668
  %v670 = vpop.xlane.xlu0 %669
  %v671 = vmul.f32 %v670, %v568
  %v672 = vsel %vm573, %v671, 0.0
  %v673 = vrot.slane %v672, 4
  %v674 = vadd.f32 %v672, %v673
  %v675 = vrot.slane %v674, 2
  %v676 = vadd.f32 %v674, %v675
  %v677 = vrot.slane %v676, 1
  %v678 = vadd.f32 %v676, %v677
  %vm679 = vcmp.eq.s32.totalorder %v563, 7
  %v680 = vsel %vm679, %v678, 0.0
  %v681 = vadd.f32 %v667, %v680
  %v682 = vmul.f32 %v681, 0.00390625
  %v683 = vld [vmem:[%s3] sm:$0xff]
  %v684 = vld [vmem:[%s3 + $0x8] sm:$0xff]
  %v685 = vld [vmem:[%s3 + $0x10] sm:$0xff]
  %v686 = vld [vmem:[%s3 + $0x18] sm:$0xff]
  %v687 = vld [vmem:[%s3 + $0x20] sm:$0xff]
  %v688 = vld [vmem:[%s3 + $0x28] sm:$0xff]
  %v689 = vld [vmem:[%s3 + $0x30] sm:$0xff]
  %v690 = vld [vmem:[%s3 + $0x38] sm:$0xff]
  %v691 = vld [vmem:[%s4] sm:$0xff]
  %v693 = vperm.slane %v691, 0
  %v694 = vperm.slane %v691, 1
  %v695 = vperm.slane %v691, 2
  %v696 = vperm.slane %v691, 3
  %v697 = vperm.slane %v691, 4
  %v698 = vperm.slane %v691, 5
  %v699 = vperm.slane %v691, 6
  %v700 = vperm.slane %v691, 7
  %v710 = vsel %vm573, %v682, 0
  %712 = vmatpush.msra.mxu0 0.0
  %713 = vmatpush.msra.mxu0 0.0
  %714 = vmatpush.msra.mxu0 0.0
  %715 = vmatpush.msra.mxu0 0.0
  %716 = vmatpush.msra.mxu0 0.0
  %717 = vmatpush.msra.mxu0 0.0
  %718 = vmatpush.msra.mxu0 0.0
  %719 = vmatpush.msra.mxu0 0.0
  %720 = vmatpush.msra.mxu0 0.0
  %721 = vmatpush.msra.mxu0 0.0
  %722 = vmatpush.msra.mxu0 0.0
  %723 = vmatpush.msra.mxu0 0.0
  %724 = vmatpush.msra.mxu0 0.0
  %725 = vmatpush.msra.mxu0 0.0
  %726 = vmatpush.msra.mxu0 0.0
  %727 = vmatpush.msra.mxu0 %v683
  %728 = vmatmul.f32.gmra.mxu0 %v710
  %v729 = vpop.f32.mrf.mxu0
  %v730 = vadd.f32 %v693, %v729
  %731 = vdwg.mxu0
  %732 = vmatpush.msra.mxu0 0.0
  %733 = vmatpush.msra.mxu0 0.0
  %734 = vmatpush.msra.mxu0 0.0
  %735 = vmatpush.msra.mxu0 0.0
  %736 = vmatpush.msra.mxu0 0.0
  %737 = vmatpush.msra.mxu0 0.0
  %738 = vmatpush.msra.mxu0 0.0
  %739 = vmatpush.msra.mxu0 0.0
  %740 = vmatpush.msra.mxu0 0.0
  %741 = vmatpush.msra.mxu0 0.0
  %742 = vmatpush.msra.mxu0 0.0
  %743 = vmatpush.msra.mxu0 0.0
  %744 = vmatpush.msra.mxu0 0.0
  %745 = vmatpush.msra.mxu0 0.0
  %746 = vmatpush.msra.mxu0 0.0
  %747 = vmatpush.msra.mxu0 %v684
  %748 = vmatmul.f32.gmra.mxu0 %v710
  %v749 = vpop.f32.mrf.mxu0
  %v750 = vadd.f32 %v694, %v749
  %751 = vdwg.mxu0
  %752 = vmatpush.msra.mxu0 0.0
  %753 = vmatpush.msra.mxu0 0.0
  %754 = vmatpush.msra.mxu0 0.0
  %755 = vmatpush.msra.mxu0 0.0
  %756 = vmatpush.msra.mxu0 0.0
  %757 = vmatpush.msra.mxu0 0.0
  %758 = vmatpush.msra.mxu0 0.0
  %759 = vmatpush.msra.mxu0 0.0
  %760 = vmatpush.msra.mxu0 0.0
  %761 = vmatpush.msra.mxu0 0.0
  %762 = vmatpush.msra.mxu0 0.0
  %763 = vmatpush.msra.mxu0 0.0
  %764 = vmatpush.msra.mxu0 0.0
  %765 = vmatpush.msra.mxu0 0.0
  %766 = vmatpush.msra.mxu0 0.0
  %767 = vmatpush.msra.mxu0 %v685
  %768 = vmatmul.f32.gmra.mxu0 %v710
  %v769 = vpop.f32.mrf.mxu0
  %v770 = vadd.f32 %v695, %v769
  %771 = vdwg.mxu0
  %772 = vmatpush.msra.mxu0 0.0
  %773 = vmatpush.msra.mxu0 0.0
  %774 = vmatpush.msra.mxu0 0.0
  %775 = vmatpush.msra.mxu0 0.0
  %776 = vmatpush.msra.mxu0 0.0
  %777 = vmatpush.msra.mxu0 0.0
  %778 = vmatpush.msra.mxu0 0.0
  %779 = vmatpush.msra.mxu0 0.0
  %780 = vmatpush.msra.mxu0 0.0
  %781 = vmatpush.msra.mxu0 0.0
  %782 = vmatpush.msra.mxu0 0.0
  %783 = vmatpush.msra.mxu0 0.0
  %784 = vmatpush.msra.mxu0 0.0
  %785 = vmatpush.msra.mxu0 0.0
  %786 = vmatpush.msra.mxu0 0.0
  %787 = vmatpush.msra.mxu0 %v686
  %788 = vmatmul.f32.gmra.mxu0 %v710
  %v789 = vpop.f32.mrf.mxu0
  %v790 = vadd.f32 %v696, %v789
  %791 = vdwg.mxu0
  %792 = vmatpush.msra.mxu0 0.0
  %793 = vmatpush.msra.mxu0 0.0
  %794 = vmatpush.msra.mxu0 0.0
  %795 = vmatpush.msra.mxu0 0.0
  %796 = vmatpush.msra.mxu0 0.0
  %797 = vmatpush.msra.mxu0 0.0
  %798 = vmatpush.msra.mxu0 0.0
  %799 = vmatpush.msra.mxu0 0.0
  %800 = vmatpush.msra.mxu0 0.0
  %801 = vmatpush.msra.mxu0 0.0
  %802 = vmatpush.msra.mxu0 0.0
  %803 = vmatpush.msra.mxu0 0.0
  %804 = vmatpush.msra.mxu0 0.0
  %805 = vmatpush.msra.mxu0 0.0
  %806 = vmatpush.msra.mxu0 0.0
  %807 = vmatpush.msra.mxu0 %v687
  %808 = vmatmul.f32.gmra.mxu0 %v710
  %v809 = vpop.f32.mrf.mxu0
  %v810 = vadd.f32 %v697, %v809
  %811 = vdwg.mxu0
  %812 = vmatpush.msra.mxu0 0.0
  %813 = vmatpush.msra.mxu0 0.0
  %814 = vmatpush.msra.mxu0 0.0
  %815 = vmatpush.msra.mxu0 0.0
  %816 = vmatpush.msra.mxu0 0.0
  %817 = vmatpush.msra.mxu0 0.0
  %818 = vmatpush.msra.mxu0 0.0
  %819 = vmatpush.msra.mxu0 0.0
  %820 = vmatpush.msra.mxu0 0.0
  %821 = vmatpush.msra.mxu0 0.0
  %822 = vmatpush.msra.mxu0 0.0
  %823 = vmatpush.msra.mxu0 0.0
  %824 = vmatpush.msra.mxu0 0.0
  %825 = vmatpush.msra.mxu0 0.0
  %826 = vmatpush.msra.mxu0 0.0
  %827 = vmatpush.msra.mxu0 %v688
  %828 = vmatmul.f32.gmra.mxu0 %v710
  %v829 = vpop.f32.mrf.mxu0
  %v830 = vadd.f32 %v698, %v829
  %831 = vdwg.mxu0
  %832 = vmatpush.msra.mxu0 0.0
  %833 = vmatpush.msra.mxu0 0.0
  %834 = vmatpush.msra.mxu0 0.0
  %835 = vmatpush.msra.mxu0 0.0
  %836 = vmatpush.msra.mxu0 0.0
  %837 = vmatpush.msra.mxu0 0.0
  %838 = vmatpush.msra.mxu0 0.0
  %839 = vmatpush.msra.mxu0 0.0
  %840 = vmatpush.msra.mxu0 0.0
  %841 = vmatpush.msra.mxu0 0.0
  %842 = vmatpush.msra.mxu0 0.0
  %843 = vmatpush.msra.mxu0 0.0
  %844 = vmatpush.msra.mxu0 0.0
  %845 = vmatpush.msra.mxu0 0.0
  %846 = vmatpush.msra.mxu0 0.0
  %847 = vmatpush.msra.mxu0 %v689
  %848 = vmatmul.f32.gmra.mxu0 %v710
  %v849 = vpop.f32.mrf.mxu0
  %v850 = vadd.f32 %v699, %v849
  %851 = vdwg.mxu0
  %852 = vmatpush.msra.mxu0 0.0
  %853 = vmatpush.msra.mxu0 0.0
  %854 = vmatpush.msra.mxu0 0.0
  %855 = vmatpush.msra.mxu0 0.0
  %856 = vmatpush.msra.mxu0 0.0
  %857 = vmatpush.msra.mxu0 0.0
  %858 = vmatpush.msra.mxu0 0.0
  %859 = vmatpush.msra.mxu0 0.0
  %860 = vmatpush.msra.mxu0 0.0
  %861 = vmatpush.msra.mxu0 0.0
  %862 = vmatpush.msra.mxu0 0.0
  %863 = vmatpush.msra.mxu0 0.0
  %864 = vmatpush.msra.mxu0 0.0
  %865 = vmatpush.msra.mxu0 0.0
  %866 = vmatpush.msra.mxu0 0.0
  %867 = vmatpush.msra.mxu0 %v690
  %868 = vmatmul.f32.gmra.mxu0 %v710
  %v869 = vpop.f32.mrf.mxu0
  %v870 = vadd.f32 %v700, %v869
  %871 = vdwg.mxu0
  %v872 = vpack.c.bf16 %v730, %v730
  %v873 = vpack.c.bf16 %v750, %v750
  %v874 = vpack.c.bf16 %v770, %v770
  %v875 = vpack.c.bf16 %v790, %v790
  %v876 = vpack.c.bf16 %v810, %v810
  %v877 = vpack.c.bf16 %v830, %v830
  %v878 = vpack.c.bf16 %v850, %v850
  %v879 = vpack.c.bf16 %v870, %v870
  %v880 = vld [vmem:[%s5] sm:$0xf]
  %v881 = vld [vmem:[%s5 + $0x4] sm:$0xf]
  %v882 = vld [vmem:[%s5 + $0x8] sm:$0xf]
  %v883 = vld [vmem:[%s5 + $0xc] sm:$0xf]
  %v884 = vld [vmem:[%s5 + $0x10] sm:$0xf]
  %v885 = vld [vmem:[%s5 + $0x14] sm:$0xf]
  %v886 = vld [vmem:[%s5 + $0x18] sm:$0xf]
  %v887 = vld [vmem:[%s5 + $0x1c] sm:$0xf]
  %v888 = vld [vmem:[%s5 + $0x20] sm:$0xf]
  %v889 = vld [vmem:[%s5 + $0x24] sm:$0xf]
  %v890 = vld [vmem:[%s5 + $0x28] sm:$0xf]
  %v891 = vld [vmem:[%s5 + $0x2c] sm:$0xf]
  %v892 = vld [vmem:[%s5 + $0x30] sm:$0xf]
  %v893 = vld [vmem:[%s5 + $0x34] sm:$0xf]
  %v894 = vld [vmem:[%s5 + $0x38] sm:$0xf]
  %v895 = vld [vmem:[%s5 + $0x3c] sm:$0xf]
  %v896 = vld [vmem:[%s5 + $0x40] sm:$0xf]
  %v897 = vld [vmem:[%s5 + $0x44] sm:$0xf]
  %v898 = vld [vmem:[%s5 + $0x48] sm:$0xf]
  %v899 = vld [vmem:[%s5 + $0x4c] sm:$0xf]
  %v900 = vld [vmem:[%s5 + $0x50] sm:$0xf]
  %v901 = vld [vmem:[%s5 + $0x54] sm:$0xf]
  %v902 = vld [vmem:[%s5 + $0x58] sm:$0xf]
  %v903 = vld [vmem:[%s5 + $0x5c] sm:$0xf]
  %v904 = vld [vmem:[%s5 + $0x60] sm:$0xf]
  %v905 = vld [vmem:[%s5 + $0x64] sm:$0xf]
  %v906 = vld [vmem:[%s5 + $0x68] sm:$0xf]
  %v907 = vld [vmem:[%s5 + $0x6c] sm:$0xf]
  %v908 = vld [vmem:[%s5 + $0x70] sm:$0xf]
  %v909 = vld [vmem:[%s5 + $0x74] sm:$0xf]
  %v910 = vld [vmem:[%s5 + $0x78] sm:$0xf]
  %v911 = vld [vmem:[%s5 + $0x7c] sm:$0xf]
  %v912 = vld [vmem:[%s5 + $0x80] sm:$0xf]
  %v913 = vld [vmem:[%s5 + $0x84] sm:$0xf]
  %v914 = vld [vmem:[%s5 + $0x88] sm:$0xf]
  %v915 = vld [vmem:[%s5 + $0x8c] sm:$0xf]
  %v916 = vld [vmem:[%s5 + $0x90] sm:$0xf]
  %v917 = vld [vmem:[%s5 + $0x94] sm:$0xf]
  %v918 = vld [vmem:[%s5 + $0x98] sm:$0xf]
  %v919 = vld [vmem:[%s5 + $0x9c] sm:$0xf]
  %v920 = vld [vmem:[%s5 + $0xa0] sm:$0xf]
  %v921 = vld [vmem:[%s5 + $0xa4] sm:$0xf]
  %v922 = vld [vmem:[%s5 + $0xa8] sm:$0xf]
  %v923 = vld [vmem:[%s5 + $0xac] sm:$0xf]
  %v924 = vld [vmem:[%s5 + $0xb0] sm:$0xf]
  %v925 = vld [vmem:[%s5 + $0xb4] sm:$0xf]
  %v926 = vld [vmem:[%s5 + $0xb8] sm:$0xf]
  %v927 = vld [vmem:[%s5 + $0xbc] sm:$0xf]
  %v928 = vld [vmem:[%s5 + $0xc0] sm:$0xf]
  %v929 = vld [vmem:[%s5 + $0xc4] sm:$0xf]
  %v930 = vld [vmem:[%s5 + $0xc8] sm:$0xf]
  %v931 = vld [vmem:[%s5 + $0xcc] sm:$0xf]
  %v932 = vld [vmem:[%s5 + $0xd0] sm:$0xf]
  %v933 = vld [vmem:[%s5 + $0xd4] sm:$0xf]
  %v934 = vld [vmem:[%s5 + $0xd8] sm:$0xf]
  %v935 = vld [vmem:[%s5 + $0xdc] sm:$0xf]
  %v936 = vld [vmem:[%s5 + $0xe0] sm:$0xf]
  %v937 = vld [vmem:[%s5 + $0xe4] sm:$0xf]
  %v938 = vld [vmem:[%s5 + $0xe8] sm:$0xf]
  %v939 = vld [vmem:[%s5 + $0xec] sm:$0xf]
  %v940 = vld [vmem:[%s5 + $0xf0] sm:$0xf]
  %v941 = vld [vmem:[%s5 + $0xf4] sm:$0xf]
  %v942 = vld [vmem:[%s5 + $0xf8] sm:$0xf]
  %v943 = vld [vmem:[%s5 + $0xfc] sm:$0xf]
  %v944 = vld [vmem:[%s5 + $0x100] sm:$0xf]
  %v945 = vld [vmem:[%s5 + $0x104] sm:$0xf]
  %v946 = vld [vmem:[%s5 + $0x108] sm:$0xf]
  %v947 = vld [vmem:[%s5 + $0x10c] sm:$0xf]
  %v948 = vld [vmem:[%s5 + $0x110] sm:$0xf]
  %v949 = vld [vmem:[%s5 + $0x114] sm:$0xf]
  %v950 = vld [vmem:[%s5 + $0x118] sm:$0xf]
  %v951 = vld [vmem:[%s5 + $0x11c] sm:$0xf]
  %v952 = vld [vmem:[%s5 + $0x120] sm:$0xf]
  %v953 = vld [vmem:[%s5 + $0x124] sm:$0xf]
  %v954 = vld [vmem:[%s5 + $0x128] sm:$0xf]
  %v955 = vld [vmem:[%s5 + $0x12c] sm:$0xf]
  %v956 = vld [vmem:[%s5 + $0x130] sm:$0xf]
  %v957 = vld [vmem:[%s5 + $0x134] sm:$0xf]
  %v958 = vld [vmem:[%s5 + $0x138] sm:$0xf]
  %v959 = vld [vmem:[%s5 + $0x13c] sm:$0xf]
  %v960 = vld [vmem:[%s5 + $0x140] sm:$0xf]
  %v961 = vld [vmem:[%s5 + $0x144] sm:$0xf]
  %v962 = vld [vmem:[%s5 + $0x148] sm:$0xf]
  %v963 = vld [vmem:[%s5 + $0x14c] sm:$0xf]
  %v964 = vld [vmem:[%s5 + $0x150] sm:$0xf]
  %v965 = vld [vmem:[%s5 + $0x154] sm:$0xf]
  %v966 = vld [vmem:[%s5 + $0x158] sm:$0xf]
  %v967 = vld [vmem:[%s5 + $0x15c] sm:$0xf]
  %v968 = vld [vmem:[%s5 + $0x160] sm:$0xf]
  %v969 = vld [vmem:[%s5 + $0x164] sm:$0xf]
  %v970 = vld [vmem:[%s5 + $0x168] sm:$0xf]
  %v971 = vld [vmem:[%s5 + $0x16c] sm:$0xf]
  %v972 = vld [vmem:[%s5 + $0x170] sm:$0xf]
  %v973 = vld [vmem:[%s5 + $0x174] sm:$0xf]
  %v974 = vld [vmem:[%s5 + $0x178] sm:$0xf]
  %v975 = vld [vmem:[%s5 + $0x17c] sm:$0xf]
  %v976 = vld [vmem:[%s5 + $0x180] sm:$0xf]
  %v977 = vld [vmem:[%s5 + $0x184] sm:$0xf]
  %v978 = vld [vmem:[%s5 + $0x188] sm:$0xf]
  %v979 = vld [vmem:[%s5 + $0x18c] sm:$0xf]
  %v980 = vld [vmem:[%s5 + $0x190] sm:$0xf]
  %v981 = vld [vmem:[%s5 + $0x194] sm:$0xf]
  %v982 = vld [vmem:[%s5 + $0x198] sm:$0xf]
  %v983 = vld [vmem:[%s5 + $0x19c] sm:$0xf]
  %v984 = vld [vmem:[%s5 + $0x1a0] sm:$0xf]
  %v985 = vld [vmem:[%s5 + $0x1a4] sm:$0xf]
  %v986 = vld [vmem:[%s5 + $0x1a8] sm:$0xf]
  %v987 = vld [vmem:[%s5 + $0x1ac] sm:$0xf]
  %v988 = vld [vmem:[%s5 + $0x1b0] sm:$0xf]
  %v989 = vld [vmem:[%s5 + $0x1b4] sm:$0xf]
  %v990 = vld [vmem:[%s5 + $0x1b8] sm:$0xf]
  %v991 = vld [vmem:[%s5 + $0x1bc] sm:$0xf]
  %v992 = vld [vmem:[%s5 + $0x1c0] sm:$0xf]
  %v993 = vld [vmem:[%s5 + $0x1c4] sm:$0xf]
  %v994 = vld [vmem:[%s5 + $0x1c8] sm:$0xf]
  %v995 = vld [vmem:[%s5 + $0x1cc] sm:$0xf]
  %v996 = vld [vmem:[%s5 + $0x1d0] sm:$0xf]
  %v997 = vld [vmem:[%s5 + $0x1d4] sm:$0xf]
  %v998 = vld [vmem:[%s5 + $0x1d8] sm:$0xf]
  %v999 = vld [vmem:[%s5 + $0x1dc] sm:$0xf]
  %v1000 = vld [vmem:[%s5 + $0x1e0] sm:$0xf]
  %v1001 = vld [vmem:[%s5 + $0x1e4] sm:$0xf]
  %v1002 = vld [vmem:[%s5 + $0x1e8] sm:$0xf]
  %v1003 = vld [vmem:[%s5 + $0x1ec] sm:$0xf]
  %v1004 = vld [vmem:[%s5 + $0x1f0] sm:$0xf]
  %v1005 = vld [vmem:[%s5 + $0x1f4] sm:$0xf]
  %v1006 = vld [vmem:[%s5 + $0x1f8] sm:$0xf]
  %v1007 = vld [vmem:[%s5 + $0x1fc] sm:$0xf]
  %v1136 = vunpack.c.l.b16 %v880
  %v1137 = vunpack.c.l.b16 %v881
  %v1138 = vunpack.c.l.b16 %v882
  %v1139 = vunpack.c.l.b16 %v883
  %v1140 = vunpack.c.l.b16 %v884
  %v1141 = vunpack.c.l.b16 %v885
  %v1142 = vunpack.c.l.b16 %v886
  %v1143 = vunpack.c.l.b16 %v887
  %v1144 = vunpack.c.l.b16 %v888
  %v1145 = vunpack.c.l.b16 %v889
  %v1146 = vunpack.c.l.b16 %v890
  %v1147 = vunpack.c.l.b16 %v891
  %v1148 = vunpack.c.l.b16 %v892
  %v1149 = vunpack.c.l.b16 %v893
  %v1150 = vunpack.c.l.b16 %v894
  %v1151 = vunpack.c.l.b16 %v895
  %v1152 = vunpack.c.l.b16 %v896
  %v1153 = vunpack.c.l.b16 %v897
  %v1154 = vunpack.c.l.b16 %v898
  %v1155 = vunpack.c.l.b16 %v899
  %v1156 = vunpack.c.l.b16 %v900
  %v1157 = vunpack.c.l.b16 %v901
  %v1158 = vunpack.c.l.b16 %v902
  %v1159 = vunpack.c.l.b16 %v903
  %v1160 = vunpack.c.l.b16 %v904
  %v1161 = vunpack.c.l.b16 %v905
  %v1162 = vunpack.c.l.b16 %v906
  %v1163 = vunpack.c.l.b16 %v907
  %v1164 = vunpack.c.l.b16 %v908
  %v1165 = vunpack.c.l.b16 %v909
  %v1166 = vunpack.c.l.b16 %v910
  %v1167 = vunpack.c.l.b16 %v911
  %v1168 = vunpack.c.l.b16 %v912
  %v1169 = vunpack.c.l.b16 %v913
  %v1170 = vunpack.c.l.b16 %v914
  %v1171 = vunpack.c.l.b16 %v915
  %v1172 = vunpack.c.l.b16 %v916
  %v1173 = vunpack.c.l.b16 %v917
  %v1174 = vunpack.c.l.b16 %v918
  %v1175 = vunpack.c.l.b16 %v919
  %v1176 = vunpack.c.l.b16 %v920
  %v1177 = vunpack.c.l.b16 %v921
  %v1178 = vunpack.c.l.b16 %v922
  %v1179 = vunpack.c.l.b16 %v923
  %v1180 = vunpack.c.l.b16 %v924
  %v1181 = vunpack.c.l.b16 %v925
  %v1182 = vunpack.c.l.b16 %v926
  %v1183 = vunpack.c.l.b16 %v927
  %v1184 = vunpack.c.l.b16 %v928
  %v1185 = vunpack.c.l.b16 %v929
  %v1186 = vunpack.c.l.b16 %v930
  %v1187 = vunpack.c.l.b16 %v931
  %v1188 = vunpack.c.l.b16 %v932
  %v1189 = vunpack.c.l.b16 %v933
  %v1190 = vunpack.c.l.b16 %v934
  %v1191 = vunpack.c.l.b16 %v935
  %v1192 = vunpack.c.l.b16 %v936
  %v1193 = vunpack.c.l.b16 %v937
  %v1194 = vunpack.c.l.b16 %v938
  %v1195 = vunpack.c.l.b16 %v939
  %v1196 = vunpack.c.l.b16 %v940
  %v1197 = vunpack.c.l.b16 %v941
  %v1198 = vunpack.c.l.b16 %v942
  %v1199 = vunpack.c.l.b16 %v943
  %v1200 = vunpack.c.l.b16 %v944
  %v1201 = vunpack.c.l.b16 %v945
  %v1202 = vunpack.c.l.b16 %v946
  %v1203 = vunpack.c.l.b16 %v947
  %v1204 = vunpack.c.l.b16 %v948
  %v1205 = vunpack.c.l.b16 %v949
  %v1206 = vunpack.c.l.b16 %v950
  %v1207 = vunpack.c.l.b16 %v951
  %v1208 = vunpack.c.l.b16 %v952
  %v1209 = vunpack.c.l.b16 %v953
  %v1210 = vunpack.c.l.b16 %v954
  %v1211 = vunpack.c.l.b16 %v955
  %v1212 = vunpack.c.l.b16 %v956
  %v1213 = vunpack.c.l.b16 %v957
  %v1214 = vunpack.c.l.b16 %v958
  %v1215 = vunpack.c.l.b16 %v959
  %v1216 = vunpack.c.l.b16 %v960
  %v1217 = vunpack.c.l.b16 %v961
  %v1218 = vunpack.c.l.b16 %v962
  %v1219 = vunpack.c.l.b16 %v963
  %v1220 = vunpack.c.l.b16 %v964
  %v1221 = vunpack.c.l.b16 %v965
  %v1222 = vunpack.c.l.b16 %v966
  %v1223 = vunpack.c.l.b16 %v967
  %v1224 = vunpack.c.l.b16 %v968
  %v1225 = vunpack.c.l.b16 %v969
  %v1226 = vunpack.c.l.b16 %v970
  %v1227 = vunpack.c.l.b16 %v971
  %v1228 = vunpack.c.l.b16 %v972
  %v1229 = vunpack.c.l.b16 %v973
  %v1230 = vunpack.c.l.b16 %v974
  %v1231 = vunpack.c.l.b16 %v975
  %v1232 = vunpack.c.l.b16 %v976
  %v1233 = vunpack.c.l.b16 %v977
  %v1234 = vunpack.c.l.b16 %v978
  %v1235 = vunpack.c.l.b16 %v979
  %v1236 = vunpack.c.l.b16 %v980
  %v1237 = vunpack.c.l.b16 %v981
  %v1238 = vunpack.c.l.b16 %v982
  %v1239 = vunpack.c.l.b16 %v983
  %v1240 = vunpack.c.l.b16 %v984
  %v1241 = vunpack.c.l.b16 %v985
  %v1242 = vunpack.c.l.b16 %v986
  %v1243 = vunpack.c.l.b16 %v987
  %v1244 = vunpack.c.l.b16 %v988
  %v1245 = vunpack.c.l.b16 %v989
  %v1246 = vunpack.c.l.b16 %v990
  %v1247 = vunpack.c.l.b16 %v991
  %v1248 = vunpack.c.l.b16 %v992
  %v1249 = vunpack.c.l.b16 %v993
  %v1250 = vunpack.c.l.b16 %v994
  %v1251 = vunpack.c.l.b16 %v995
  %v1252 = vunpack.c.l.b16 %v996
  %v1253 = vunpack.c.l.b16 %v997
  %v1254 = vunpack.c.l.b16 %v998
  %v1255 = vunpack.c.l.b16 %v999
  %v1256 = vunpack.c.l.b16 %v1000
  %v1257 = vunpack.c.l.b16 %v1001
  %v1258 = vunpack.c.l.b16 %v1002
  %v1259 = vunpack.c.l.b16 %v1003
  %v1260 = vunpack.c.l.b16 %v1004
  %v1261 = vunpack.c.l.b16 %v1005
  %v1262 = vunpack.c.l.b16 %v1006
  %v1263 = vunpack.c.l.b16 %v1007
  %v1264 = vpack.c.b16 %v1137, %v1136
  %v1265 = vpack.c.b16 %v1139, %v1138
  %v1266 = vpack.c.b16 %v1141, %v1140
  %v1267 = vpack.c.b16 %v1143, %v1142
  %v1268 = vpack.c.b16 %v1145, %v1144
  %v1269 = vpack.c.b16 %v1147, %v1146
  %v1270 = vpack.c.b16 %v1149, %v1148
  %v1271 = vpack.c.b16 %v1151, %v1150
  %v1272 = vpack.c.b16 %v1153, %v1152
  %v1273 = vpack.c.b16 %v1155, %v1154
  %v1274 = vpack.c.b16 %v1157, %v1156
  %v1275 = vpack.c.b16 %v1159, %v1158
  %v1276 = vpack.c.b16 %v1161, %v1160
  %v1277 = vpack.c.b16 %v1163, %v1162
  %v1278 = vpack.c.b16 %v1165, %v1164
  %v1279 = vpack.c.b16 %v1167, %v1166
  %v1280 = vpack.c.b16 %v1169, %v1168
  %v1281 = vpack.c.b16 %v1171, %v1170
  %v1282 = vpack.c.b16 %v1173, %v1172
  %v1283 = vpack.c.b16 %v1175, %v1174
  %v1284 = vpack.c.b16 %v1177, %v1176
  %v1285 = vpack.c.b16 %v1179, %v1178
  %v1286 = vpack.c.b16 %v1181, %v1180
  %v1287 = vpack.c.b16 %v1183, %v1182
  %v1288 = vpack.c.b16 %v1185, %v1184
  %v1289 = vpack.c.b16 %v1187, %v1186
  %v1290 = vpack.c.b16 %v1189, %v1188
  %v1291 = vpack.c.b16 %v1191, %v1190
  %v1292 = vpack.c.b16 %v1193, %v1192
  %v1293 = vpack.c.b16 %v1195, %v1194
  %v1294 = vpack.c.b16 %v1197, %v1196
  %v1295 = vpack.c.b16 %v1199, %v1198
  %v1296 = vpack.c.b16 %v1201, %v1200
  %v1297 = vpack.c.b16 %v1203, %v1202
  %v1298 = vpack.c.b16 %v1205, %v1204
  %v1299 = vpack.c.b16 %v1207, %v1206
  %v1300 = vpack.c.b16 %v1209, %v1208
  %v1301 = vpack.c.b16 %v1211, %v1210
  %v1302 = vpack.c.b16 %v1213, %v1212
  %v1303 = vpack.c.b16 %v1215, %v1214
  %v1304 = vpack.c.b16 %v1217, %v1216
  %v1305 = vpack.c.b16 %v1219, %v1218
  %v1306 = vpack.c.b16 %v1221, %v1220
  %v1307 = vpack.c.b16 %v1223, %v1222
  %v1308 = vpack.c.b16 %v1225, %v1224
  %v1309 = vpack.c.b16 %v1227, %v1226
  %v1310 = vpack.c.b16 %v1229, %v1228
  %v1311 = vpack.c.b16 %v1231, %v1230
  %v1312 = vpack.c.b16 %v1233, %v1232
  %v1313 = vpack.c.b16 %v1235, %v1234
  %v1314 = vpack.c.b16 %v1237, %v1236
  %v1315 = vpack.c.b16 %v1239, %v1238
  %v1316 = vpack.c.b16 %v1241, %v1240
  %v1317 = vpack.c.b16 %v1243, %v1242
  %v1318 = vpack.c.b16 %v1245, %v1244
  %v1319 = vpack.c.b16 %v1247, %v1246
  %v1320 = vpack.c.b16 %v1249, %v1248
  %v1321 = vpack.c.b16 %v1251, %v1250
  %v1322 = vpack.c.b16 %v1253, %v1252
  %v1323 = vpack.c.b16 %v1255, %v1254
  %v1324 = vpack.c.b16 %v1257, %v1256
  %v1325 = vpack.c.b16 %v1259, %v1258
  %v1326 = vpack.c.b16 %v1261, %v1260
  %v1327 = vpack.c.b16 %v1263, %v1262
  %1392 = vmatpush.bf16.msra.mxu0 %v1271
  %1393 = vmatpush.bf16.msra.mxu0 %v1270
  %1394 = vmatpush.bf16.msra.mxu0 %v1269
  %1395 = vmatpush.bf16.msra.mxu0 %v1268
  %1396 = vmatpush.bf16.msra.mxu0 %v1267
  %1397 = vmatpush.bf16.msra.mxu0 %v1266
  %1398 = vmatpush.bf16.msra.mxu0 %v1265
  %1399 = vmatpush.bf16.msra.mxu0 %v1264
  %1400 = vmatmul.bf16.gmra.mxu0 %v872
  %v1401 = vpop.f32.mrf.mxu0
  %v1402 = vadd.f32 0.0, %v1401
  %v1403 = vpop.f32.mrf.mxu0
  %1404 = vdwg.mxu0
  %1405 = vmatpush.bf16.msra.mxu0 %v1279
  %1406 = vmatpush.bf16.msra.mxu0 %v1278
  %1407 = vmatpush.bf16.msra.mxu0 %v1277
  %1408 = vmatpush.bf16.msra.mxu0 %v1276
  %1409 = vmatpush.bf16.msra.mxu0 %v1275
  %1410 = vmatpush.bf16.msra.mxu0 %v1274
  %1411 = vmatpush.bf16.msra.mxu0 %v1273
  %1412 = vmatpush.bf16.msra.mxu0 %v1272
  %1413 = vmatmul.bf16.gmra.mxu0 %v873
  %v1414 = vpop.f32.mrf.mxu0
  %v1415 = vadd.f32 %v1402, %v1414
  %v1416 = vpop.f32.mrf.mxu0
  %1417 = vdwg.mxu0
  %1418 = vmatpush.bf16.msra.mxu0 %v1287
  %1419 = vmatpush.bf16.msra.mxu0 %v1286
  %1420 = vmatpush.bf16.msra.mxu0 %v1285
  %1421 = vmatpush.bf16.msra.mxu0 %v1284
  %1422 = vmatpush.bf16.msra.mxu0 %v1283
  %1423 = vmatpush.bf16.msra.mxu0 %v1282
  %1424 = vmatpush.bf16.msra.mxu0 %v1281
  %1425 = vmatpush.bf16.msra.mxu0 %v1280
  %1426 = vmatmul.bf16.gmra.mxu0 %v874
  %v1427 = vpop.f32.mrf.mxu0
  %v1428 = vadd.f32 %v1415, %v1427
  %v1429 = vpop.f32.mrf.mxu0
  %1430 = vdwg.mxu0
  %1431 = vmatpush.bf16.msra.mxu0 %v1295
  %1432 = vmatpush.bf16.msra.mxu0 %v1294
  %1433 = vmatpush.bf16.msra.mxu0 %v1293
  %1434 = vmatpush.bf16.msra.mxu0 %v1292
  %1435 = vmatpush.bf16.msra.mxu0 %v1291
  %1436 = vmatpush.bf16.msra.mxu0 %v1290
  %1437 = vmatpush.bf16.msra.mxu0 %v1289
  %1438 = vmatpush.bf16.msra.mxu0 %v1288
  %1439 = vmatmul.bf16.gmra.mxu0 %v875
  %v1440 = vpop.f32.mrf.mxu0
  %v1441 = vadd.f32 %v1428, %v1440
  %v1442 = vpop.f32.mrf.mxu0
  %1443 = vdwg.mxu0
  %1444 = vmatpush.bf16.msra.mxu0 %v1303
  %1445 = vmatpush.bf16.msra.mxu0 %v1302
  %1446 = vmatpush.bf16.msra.mxu0 %v1301
  %1447 = vmatpush.bf16.msra.mxu0 %v1300
  %1448 = vmatpush.bf16.msra.mxu0 %v1299
  %1449 = vmatpush.bf16.msra.mxu0 %v1298
  %1450 = vmatpush.bf16.msra.mxu0 %v1297
  %1451 = vmatpush.bf16.msra.mxu0 %v1296
  %1452 = vmatmul.bf16.gmra.mxu0 %v876
  %v1453 = vpop.f32.mrf.mxu0
  %v1454 = vadd.f32 %v1441, %v1453
  %v1455 = vpop.f32.mrf.mxu0
  %1456 = vdwg.mxu0
  %1457 = vmatpush.bf16.msra.mxu0 %v1311
  %1458 = vmatpush.bf16.msra.mxu0 %v1310
  %1459 = vmatpush.bf16.msra.mxu0 %v1309
  %1460 = vmatpush.bf16.msra.mxu0 %v1308
  %1461 = vmatpush.bf16.msra.mxu0 %v1307
  %1462 = vmatpush.bf16.msra.mxu0 %v1306
  %1463 = vmatpush.bf16.msra.mxu0 %v1305
  %1464 = vmatpush.bf16.msra.mxu0 %v1304
  %1465 = vmatmul.bf16.gmra.mxu0 %v877
  %v1466 = vpop.f32.mrf.mxu0
  %v1467 = vadd.f32 %v1454, %v1466
  %v1468 = vpop.f32.mrf.mxu0
  %1469 = vdwg.mxu0
  %1470 = vmatpush.bf16.msra.mxu0 %v1319
  %1471 = vmatpush.bf16.msra.mxu0 %v1318
  %1472 = vmatpush.bf16.msra.mxu0 %v1317
  %1473 = vmatpush.bf16.msra.mxu0 %v1316
  %1474 = vmatpush.bf16.msra.mxu0 %v1315
  %1475 = vmatpush.bf16.msra.mxu0 %v1314
  %1476 = vmatpush.bf16.msra.mxu0 %v1313
  %1477 = vmatpush.bf16.msra.mxu0 %v1312
  %1478 = vmatmul.bf16.gmra.mxu0 %v878
  %v1479 = vpop.f32.mrf.mxu0
  %v1480 = vadd.f32 %v1467, %v1479
  %v1481 = vpop.f32.mrf.mxu0
  %1482 = vdwg.mxu0
  %1483 = vmatpush.bf16.msra.mxu0 %v1327
  %1484 = vmatpush.bf16.msra.mxu0 %v1326
  %1485 = vmatpush.bf16.msra.mxu0 %v1325
  %1486 = vmatpush.bf16.msra.mxu0 %v1324
  %1487 = vmatpush.bf16.msra.mxu0 %v1323
  %1488 = vmatpush.bf16.msra.mxu0 %v1322
  %1489 = vmatpush.bf16.msra.mxu0 %v1321
  %1490 = vmatpush.bf16.msra.mxu0 %v1320
  %1491 = vmatmul.bf16.gmra.mxu0 %v879
  %v1492 = vpop.f32.mrf.mxu0
  %v1493 = vadd.f32 %v1480, %v1492
  %v1494 = vpop.f32.mrf.mxu0
  %1495 = vdwg.mxu0
  %v1496 = vld [vmem:[%s6] sm:$0x1]
  %v1498 = vperm.slane %v1496, 0
  %v1500 = vadd.f32 %v1493, %v1498
  %v1501 = vtanh.pop %v1500
  %v1502 = vld [vmem:[%s7] sm:$0x1]
  %v1504 = vperm.slane %v1502, 0
  %v1506 = vmul.f32 %v1501, %v1504
  %vm1507 = vcmask 523264
  %v1508 = vsel %vm1507, %v1506, 0.0
  %1509 = vadd.xlane.f32.xlu0 %v1508
  %v1510 = vpop.xlane.xlu0 %1509
  %v1511 = vld [vmem:[#allocation2] sm:$0x1]
  %v1513 = vperm.slane %v1511, 0
  %v1515 = vadd.f32 %v1510, %v1513
  %vm1516 = vcmask 7168
  %v1517 = vsel %vm1516, %v1515, -inf
  %v1518 = vrot.slane %v1517, 4
  %v1519 = vmax.f32 %v1517, %v1518
  %v1520 = vrot.slane %v1519, 2
  %v1521 = vmax.f32 %v1519, %v1520
  %v1522 = vrot.slane %v1521, 1
  %v1523 = vmax.f32 %v1521, %v1522
  %v1524 = vsub.f32 %v1515, %v1523
  %v1525 = vmul.f32 %v1524, 1.442695
  %v1526 = vpow.pop %v1525
  %v1527 = vsel %vm1516, %v1526, 0.0
  %v1528 = vrot.slane %v1527, 4
  %v1529 = vadd.f32 %v1527, %v1528
  %v1530 = vrot.slane %v1529, 2
  %v1531 = vadd.f32 %v1529, %v1530
  %v1532 = vrot.slane %v1531, 1
  %v1533 = vadd.f32 %v1531, %v1532
  %v1534 = vrcp.pop %v1533
  %v1535 = vmul.f32 %v1533, %v1534
  %v1536 = vsub.f32 1.0, %v1535
  %v1537 = vmul.f32 %v1534, %v1536
  %v1538 = vadd.f32 %v1534, %v1537
  %vm1539 = vweird.f32 %v1533
  %vm1540 = vweird.f32 %v1534
  %vm1541 = vmor %vm1539, %vm1540
  %v1542 = vsel %vm1541, %v1534, %v1538
  %v1543 = vand.u32 2147483647, %v1533
  %vm1544 = vcmp.eq.f32.partialorder %v1543, 8.507059e+37
  %v1545 = vand.u32 %v1533, 2147483648
  %v1546 = vor.u32 1.1754944e-38, %v1545
  %v1547 = vsel %vm1544, %v1546, %v1542
  %v1548 = vmul.f32 %v1526, %v1547
  %1550 = vset.pattern.permute.xlu0 0
  %1551 = vperm.xlu0 %1550, %v1548
  %v1552 = vpop.permute.xlu0 %1551
  %v1554 = vmul.f32 %v1552, %v1493
  %vm1555 = vcmask 589312
  %v1556 = vsel %vm1555, %v1554, 0.0
  %v1557 = vrot.slane %v1556, 4
  %v1558 = vadd.f32 %v1556, %v1557
  %v1559 = vrot.slane %v1558, 2
  %v1560 = vadd.f32 %v1558, %v1559
  %v1561 = vrot.slane %v1560, 1
  %v1562 = vadd.f32 %v1560, %v1561
  %v1563 = vld [vmem:[%s9] sm:$0x1]
  %v1565 = vperm.slane %v1563, 0
  %1566 = vrot.lane.b32.xlu0 %v1565, 64
  %v1567 = vpop.permute.xlu0 %1566
  %v1569 = vadd.f32 %v1562, %v1567
  %vm1570 = vcmask 582144
  %v1571 = vsel %vm1570, %v1569, -inf
  %1572 = vmax.xlane.f32.xlu0 %v1571
  %v1573 = vpop.xlane.xlu0 %1572
  %v1574 = vsub.f32 %v1569, %v1573
  %v1575 = vmul.f32 %v1574, 1.442695
  %v1576 = vpow.pop %v1575
  %1578 = vrot.lane.b32.xlu0 %v1576, 64
  %v1579 = vpop.permute.xlu0 %1578
  %vm1581 = vcmask 57344
  %v1582 = vsel %vm1581, %v1579, 0.0
  %1583 = vadd.xlane.f32.xlu0 %v1582
  %v1584 = vpop.xlane.xlu0 %1583
  %v1585 = vrcp.pop %v1584
  %v1586 = vmul.f32 %v1584, %v1585
  %v1587 = vsub.f32 1.0, %v1586
  %v1588 = vmul.f32 %v1585, %v1587
  %v1589 = vadd.f32 %v1585, %v1588
  %vm1590 = vweird.f32 %v1584
  %vm1591 = vweird.f32 %v1585
  %vm1592 = vmor %vm1590, %vm1591
  %v1593 = vsel %vm1592, %v1585, %v1589
  %v1594 = vand.u32 2147483647, %v1584
  %vm1595 = vcmp.eq.f32.partialorder %v1594, 8.507059e+37
  %v1596 = vand.u32 %v1584, 2147483648
  %v1597 = vor.u32 1.1754944e-38, %v1596
  %v1598 = vsel %vm1595, %v1597, %v1593
  %v1599 = vmul.f32 %v1576, %v1598
  %v1600 = vmul.f32 %v1552, %v568
  %v1601 = vsel %vm573, %v1600, 0.0
  %v1602 = vrot.slane %v1601, 4
  %v1603 = vadd.f32 %v1601, %v1602
  %v1604 = vrot.slane %v1603, 2
  %v1605 = vadd.f32 %v1603, %v1604
  %v1606 = vrot.slane %v1605, 1
  %v1607 = vadd.f32 %v1605, %v1606
  %v1608 = vperm.slane %v1599, 0
  %1610 = vrot.lane.b32.xlu0 %v1607, 64
  %v1611 = vpop.permute.xlu0 %1610
  %v1613 = vsel %vm581, %v1608, %v1611
  %1615 = vrot.lane.b32.xlu0 %v1613, 64
  %v1616 = vpop.permute.xlu0 %1615
  %vm1618 = vcmask 58368
  %1619 = vst.msk [vmem:[%s10] sm:$0x3] %vm1618, %v1616
  // Predicated region
  $region42: #{attention_modern_multi_forward.1} parent=0 // pred_check
    _
  $region43: #{attention_modern_multi_forward.1} parent=0 // pred_check_branch
    %1621 = sbr.rel (0) target = $region45
  $region44: #{attention_modern_multi_forward.1} parent=0 // pred_region
    _
  $region45: #{attention_modern_multi_forward.1} parent=0 // pred_fallthru
    _
  // Predicated region
  $region46: #{attention_modern_multi_forward.1} parent=0 // pred_check
    _
  $region47: #{attention_modern_multi_forward.1} parent=0 // pred_check_branch
    %1623 = sbr.rel (0) target = $region49
  $region48: #{attention_modern_multi_forward.1} parent=0 // pred_region
    _
  $region49: #{attention_modern_multi_forward.1} parent=0 // pred_fallthru
    _

</llo_original>
